<compile_context>
chip_gen: v5e
topology: v5e:2x2
jax: 0.10.0
libtpu: 0.0.40
codegen_flags: <defaults>
</compile_context>

<pallas_src>
import numpy as np
import jax
import jax.numpy as jnp
from jax.experimental import pallas as pl
from jax.experimental.pallas import tpu as pltpu

KH = KW = 5
STRIDE = 2
PAD = 2
C_OUT = 5          # conv output channels (Conv_sec(in_dim, 5, 5, 5, ...))
FC1_IN = 980       # hard-coded in the module: 5 * 14 * 14  -> implies 28x28 input
FC1_OUT = 100
NEG_BIG = -1e30    # bias padding for unused class lanes (exp() -> 0, no inf/nan)
LANE = 128
SUB = 8


def _round_up(x, m):
    return ((x + m - 1) // m) * m


# ------------------------------ Pallas kernel -------------------------------

def _fused_kernel(x1_ref, x2_ref, wd_ref, bd_ref, w1_ref, b1_ref, w2_ref,
                  b2_ref, o_ref):
    """Whole network for TB samples (one grid step).

    x1_ref/x2_ref : (TB, IN)       flattened NCHW input shares
    wd_ref        : (IN, HID_P)    dense conv-equivalent matrix (NCHW-flat cols)
    bd_ref        : (1, HID_P)     conv bias broadcast over spatial, zero pad
    w1_ref        : (HID_P, F1P)   fc1 weight, zero-padded
    b1_ref        : (1, F1P)
    w2_ref        : (F1P, NP)      fc2 weight, zero-padded
    b2_ref        : (1, NP)        fc2 bias, padded lanes = -1e30
    o_ref         : (TB, NP)       log-softmax output (padded lanes junk)
    """
    x = x1_ref[...] + x2_ref[...]                                # plaintext (TB, IN)

    # Conv as one dense matmul: columns of wd are already in NCHW-flatten
    # order, so the ReLU'd activation feeds fc1 with zero relayout.
    a = jnp.dot(x, wd_ref[...], preferred_element_type=jnp.float32)
    a = jnp.maximum(a + bd_ref[...], 0.0)                        # (TB, HID_P)

    h = jnp.dot(a, w1_ref[...], preferred_element_type=jnp.float32)
    h = jnp.maximum(h + b1_ref[...], 0.0)                        # (TB, F1P)

    logits = jnp.dot(h, w2_ref[...],
                     preferred_element_type=jnp.float32) + b2_ref[...]
    m = jnp.max(logits, axis=-1, keepdims=True)
    z = logits - m
    lse = jnp.log(jnp.sum(jnp.exp(z), axis=-1, keepdims=True))
    o_ref[...] = z - lse                                         # (TB, NP)


def _pick_tb(b):
    """Batch tile: multiple of 8, capped at 256, >=2 grid steps when batch is big."""
    b8 = _round_up(b, SUB)
    if b8 <= 16:
        return b8                              # tiny batch: single step
    if b8 >= 512:
        return 256                             # cap for v7x VMEM comfort
    return _round_up((b8 + 1) // 2, SUB)       # two steps (v7x: 2 TensorCores)


def _minionn_fused(x1f, x2f, wd, bd, w1, b1, w2, b2, tb):
    b_pad, in_feat = x1f.shape
    hid_p = wd.shape[1]
    f1_p = w1.shape[1]
    n_p = w2.shape[1]
    grid = b_pad // tb

    cost = pl.CostEstimate(
        flops=2 * b_pad * (in_feat * hid_p + hid_p * f1_p + f1_p * n_p),
        transcendentals=b_pad * (n_p + 1),
        bytes_accessed=4 * (2 * b_pad * in_feat + wd.size + bd.size + w1.size
                            + b1.size + w2.size + b2.size + b_pad * n_p),
    )

    return pl.pallas_call(
        _fused_kernel,
        out_shape=jax.ShapeDtypeStruct((b_pad, n_p), jnp.float32),
        grid=(grid,),
        in_specs=[
            pl.BlockSpec((tb, in_feat), lambda i: (i, 0)),       # per-tile shares
            pl.BlockSpec((tb, in_feat), lambda i: (i, 0)),
            pl.BlockSpec((in_feat, hid_p), lambda i: (0, 0)),    # weights: resident
            pl.BlockSpec((1, hid_p), lambda i: (0, 0)),
            pl.BlockSpec((hid_p, f1_p), lambda i: (0, 0)),
            pl.BlockSpec((1, f1_p), lambda i: (0, 0)),
            pl.BlockSpec((f1_p, n_p), lambda i: (0, 0)),
            pl.BlockSpec((1, n_p), lambda i: (0, 0)),
        ],
        out_specs=pl.BlockSpec((tb, n_p), lambda i: (i, 0)),
        compiler_params=pltpu.CompilerParams(
            dimension_semantics=("parallel",),                   # batch over cores
            vmem_limit_bytes=32 * 1024 * 1024,
        ),
        cost_estimate=cost,
    )(x1f, x2f, wd, bd, w1, b1, w2, b2)


# ------------------------------ glue / params -------------------------------

def init_params(key, in_dim, n_class, h=28, w=28):
    ks = jax.random.split(key, 6)
    wc = jax.random.normal(ks[0], (C_OUT, in_dim, KH, KW), jnp.float32) * 0.1
    bc = jax.random.normal(ks[1], (C_OUT,), jnp.float32) * 0.1
    # FullyConnect convention: y = x @ W + b with W shape (in, out)
    w1 = jax.random.normal(ks[2], (FC1_IN, FC1_OUT), jnp.float32) * 0.05
    b1 = jax.random.normal(ks[3], (FC1_OUT,), jnp.float32) * 0.05
    w2 = jax.random.normal(ks[4], (FC1_OUT, n_class), jnp.float32) * 0.05
    b2 = jax.random.normal(ks[5], (n_class,), jnp.float32) * 0.05

    ho = (h + 2 * PAD - KH) // STRIDE + 1
    wo = (w + 2 * PAD - KW) // STRIDE + 1
    hid = C_OUT * ho * wo
    assert hid == FC1_IN, "input spatial size inconsistent with fc1(980, .)"

    in_feat = in_dim * h * w
    hid_p = _round_up(hid, LANE)                   # 980 -> 1024
    f1_p = _round_up(FC1_OUT, LANE)                # 100 -> 128
    n_p = _round_up(max(n_class, 1), LANE)         # classes -> full lane group

    # Dense conv-equivalent matrix: wd[i, :] = conv(e_i) flattened NCHW, built
    # ONCE at init by pushing the identity basis through the exact same conv
    # (so padding / stride / ordering match the reference by construction).
    eye = jnp.eye(in_feat, dtype=jnp.float32).reshape(in_feat, in_dim, h, w)
    wd = jax.lax.conv_general_dilated(
        eye, wc, (STRIDE, STRIDE), ((PAD, PAD), (PAD, PAD)),
        dimension_numbers=("NCHW", "OIHW", "NCHW"),
        precision=jax.lax.Precision.HIGHEST).reshape(in_feat, hid)
    bd = jnp.broadcast_to(bc[:, None], (C_OUT, ho * wo)).reshape(1, hid)

    params = dict(wc=wc, bc=bc, w1=w1, b1=b1, w2=w2, b2=b2)
    # Kernel-layout tensors, built once at init (no per-call relayout work).
    params["wd_pad"] = jnp.zeros((in_feat, hid_p), jnp.float32).at[:, :hid].set(wd)
    params["bd_pad"] = jnp.zeros((1, hid_p), jnp.float32).at[:, :hid].set(bd)
    params["w1_pad"] = jnp.zeros((hid_p, f1_p), jnp.float32).at[:hid, :FC1_OUT].set(w1)
    params["b1_pad"] = jnp.zeros((1, f1_p), jnp.float32).at[0, :FC1_OUT].set(b1)
    params["w2_pad"] = jnp.zeros((f1_p, n_p), jnp.float32).at[:FC1_OUT, :n_class].set(w2)
    params["b2_pad"] = jnp.full((1, n_p), NEG_BIG, jnp.float32).at[0, :n_class].set(b2)
    return params


@jax.jit
def minionn_fivelayer_forward(x1, x2, params):
    """Shares in, shares out: out1 + out2 == logsoftmax(net(x1 + x2))."""
    B, cin, H, W = x1.shape
    in_feat = cin * H * W
    assert in_feat == params["wd_pad"].shape[0]

    # Flatten NCHW (free reshape); the x1+x2 add happens inside the kernel.
    x1f = x1.reshape(B, in_feat).astype(jnp.float32)
    x2f = x2.reshape(B, in_feat).astype(jnp.float32)

    tb = _pick_tb(B)
    b_pad = _round_up(B, tb)
    if b_pad != B:
        padding = ((0, b_pad - B), (0, 0))
        x1f = jnp.pad(x1f, padding)
        x2f = jnp.pad(x2f, padding)

    out_pad = _minionn_fused(
        x1f, x2f, params["wd_pad"], params["bd_pad"], params["w1_pad"],
        params["b1_pad"], params["w2_pad"], params["b2_pad"], tb)   # (b_pad, NP)

    n_class = params["w2"].shape[1]
    out = out_pad[:B, :n_class]
    # Output shares + timing placeholder (mirrors (out1, out2, dfc_time1+dfc_time2)).
    # TODO(synk): returning (result, zeros) leaks the plaintext; the secure
    # two-share / Beaver-triple protocol is not reproduced here.
    return out, jnp.zeros_like(out), 0.0


def reference_forward(x1, x2, params):
    """Pure-JAX NCHW reference matching the PyTorch plaintext semantics."""
    x = (x1 + x2).astype(jnp.float32)
    y = jax.lax.conv_general_dilated(
        x, params["wc"], (STRIDE, STRIDE), ((PAD, PAD), (PAD, PAD)),
        dimension_numbers=("NCHW", "OIHW", "NCHW"),
        precision=jax.lax.Precision.HIGHEST)
    y = jnp.maximum(y + params["bc"].reshape(1, -1, 1, 1), 0.0)
    y = y.reshape(x.shape[0], -1)                                # NCHW flatten
    h = jnp.maximum(
        jnp.dot(y, params["w1"], precision=jax.lax.Precision.HIGHEST)
        + params["b1"], 0.0)
    logits = (jnp.dot(h, params["w2"], precision=jax.lax.Precision.HIGHEST)
              + params["b2"])
    return jax.nn.log_softmax(logits, axis=1)


# ----------------------------------- main -----------------------------------

if __name__ == "__main__":
    IN_DIM, HW, N_CLASS = 1, 28, 10              # 28x28 required by fc1(980, 100)

    key = jax.random.PRNGKey(0)
    k_params, k_x1, k_x2 = jax.random.split(key, 3)
    params = init_params(k_params, IN_DIM, N_CLASS, HW, HW)

    for B in (2, 20):                            # grid=1 path and grid=2 + padding path
        k_a, k_b = jax.random.split(jax.random.fold_in(key, B))
        x1 = jax.random.normal(k_a, (B, IN_DIM, HW, HW), jnp.float32)
        x2 = jax.random.normal(k_b, (B, IN_DIM, HW, HW), jnp.float32)

        out1, out2, dfc_time = minionn_fivelayer_forward(x1, x2, params)
        out1 = jax.block_until_ready(out1)
        out2 = jax.block_until_ready(out2)

        ref = jax.block_until_ready(reference_forward(x1, x2, params))
        np.testing.assert_allclose(np.asarray(out1 + out2), np.asarray(ref),
                                   rtol=1e-4, atol=1e-4)

    print("KERNEL_OK")
</pallas_src>

<mosaic_0001>
module attributes {stable_mosaic.version = 11 : i64} {
  func.func @_fused_kernel(%arg0: i32, %arg1: memref<8x784xf32, #tpu.memory_space<vmem>>, %arg2: memref<8x784xf32, #tpu.memory_space<vmem>>, %arg3: memref<784x1024xf32, #tpu.memory_space<vmem>>, %arg4: memref<1x1024xf32, #tpu.memory_space<vmem>>, %arg5: memref<1024x128xf32, #tpu.memory_space<vmem>>, %arg6: memref<1x128xf32, #tpu.memory_space<vmem>>, %arg7: memref<128x128xf32, #tpu.memory_space<vmem>>, %arg8: memref<1x128xf32, #tpu.memory_space<vmem>>, %arg9: memref<8x128xf32, #tpu.memory_space<vmem>>) attributes {dimension_semantics = [#tpu.dimension_semantics<parallel>], iteration_bounds = array<i64: 1>, scalar_prefetch = 0 : i64, scratch_operands = 0 : i64, tpu.core_type = #tpu.core_type<tc>, window_params = [{transform_indices = @transform_0, window_bounds = array<i64: 8, 784>}, {transform_indices = @transform_1, window_bounds = array<i64: 8, 784>}, {pipeline_mode = #tpu.pipeline_mode<synchronous>, transform_indices = @transform_2, window_bounds = array<i64: 784, 1024>}, {pipeline_mode = #tpu.pipeline_mode<synchronous>, transform_indices = @transform_3, window_bounds = array<i64: 1, 1024>}, {pipeline_mode = #tpu.pipeline_mode<synchronous>, transform_indices = @transform_4, window_bounds = array<i64: 1024, 128>}, {pipeline_mode = #tpu.pipeline_mode<synchronous>, transform_indices = @transform_5, window_bounds = array<i64: 1, 128>}, {pipeline_mode = #tpu.pipeline_mode<synchronous>, transform_indices = @transform_6, window_bounds = array<i64: 128, 128>}, {pipeline_mode = #tpu.pipeline_mode<synchronous>, transform_indices = @transform_7, window_bounds = array<i64: 1, 128>}, {transform_indices = @transform_8, window_bounds = array<i64: 8, 128>}]} {
    %c0 = arith.constant 0 : index
    %c0_0 = arith.constant 0 : index
    %0 = vector.load %arg1[%c0, %c0_0] : memref<8x784xf32, #tpu.memory_space<vmem>>, vector<8x784xf32>
    %c0_1 = arith.constant 0 : index
    %c0_2 = arith.constant 0 : index
    %1 = vector.load %arg2[%c0_1, %c0_2] : memref<8x784xf32, #tpu.memory_space<vmem>>, vector<8x784xf32>
    %2 = arith.addf %0, %1 : vector<8x784xf32>
    %c0_3 = arith.constant 0 : index
    %c0_4 = arith.constant 0 : index
    %3 = vector.load %arg3[%c0_3, %c0_4] : memref<784x1024xf32, #tpu.memory_space<vmem>>, vector<784x1024xf32>
    %cst = arith.constant dense<0.000000e+00> : vector<8x1024xf32>
    %4 = tpu.matmul %2, %3, %cst {dimension_numbers = #tpu.dot_dimension_numbers<[1], [0], [0], [1], [0, 0, 1, 1], [], []>} : vector<8x784xf32>, vector<784x1024xf32>, vector<8x1024xf32> -> vector<8x1024xf32>
    %c0_5 = arith.constant 0 : index
    %c0_6 = arith.constant 0 : index
    %5 = vector.load %arg4[%c0_5, %c0_6] : memref<1x1024xf32, #tpu.memory_space<vmem>>, vector<1x1024xf32>
    %6 = vector.broadcast %5 : vector<1x1024xf32> to vector<8x1024xf32>
    %7 = arith.addf %4, %6 : vector<8x1024xf32>
    %cst_7 = arith.constant 0.000000e+00 : f32
    %8 = vector.broadcast %cst_7 : f32 to vector<8x1024xf32>
    %9 = arith.maximumf %7, %8 : vector<8x1024xf32>
    %c0_8 = arith.constant 0 : index
    %c0_9 = arith.constant 0 : index
    %10 = vector.load %arg5[%c0_8, %c0_9] : memref<1024x128xf32, #tpu.memory_space<vmem>>, vector<1024x128xf32>
    %cst_10 = arith.constant dense<0.000000e+00> : vector<8x128xf32>
    %11 = tpu.matmul %9, %10, %cst_10 {dimension_numbers = #tpu.dot_dimension_numbers<[1], [0], [0], [1], [0, 0, 1, 1], [], []>} : vector<8x1024xf32>, vector<1024x128xf32>, vector<8x128xf32> -> vector<8x128xf32>
    %c0_11 = arith.constant 0 : index
    %c0_12 = arith.constant 0 : index
    %12 = vector.load %arg6[%c0_11, %c0_12] : memref<1x128xf32, #tpu.memory_space<vmem>>, vector<1x128xf32>
    %13 = vector.broadcast %12 : vector<1x128xf32> to vector<8x128xf32>
    %14 = arith.addf %11, %13 : vector<8x128xf32>
    %cst_13 = arith.constant 0.000000e+00 : f32
    %15 = vector.broadcast %cst_13 : f32 to vector<8x128xf32>
    %16 = arith.maximumf %14, %15 : vector<8x128xf32>
    %c0_14 = arith.constant 0 : index
    %c0_15 = arith.constant 0 : index
    %17 = vector.load %arg7[%c0_14, %c0_15] : memref<128x128xf32, #tpu.memory_space<vmem>>, vector<128x128xf32>
    %cst_16 = arith.constant dense<0.000000e+00> : vector<8x128xf32>
    %18 = tpu.matmul %16, %17, %cst_16 {dimension_numbers = #tpu.dot_dimension_numbers<[1], [0], [0], [1], [0, 0, 1, 1], [], []>} : vector<8x128xf32>, vector<128x128xf32>, vector<8x128xf32> -> vector<8x128xf32>
    %c0_17 = arith.constant 0 : index
    %c0_18 = arith.constant 0 : index
    %19 = vector.load %arg8[%c0_17, %c0_18] : memref<1x128xf32, #tpu.memory_space<vmem>>, vector<1x128xf32>
    %20 = vector.broadcast %19 : vector<1x128xf32> to vector<8x128xf32>
    %21 = arith.addf %18, %20 : vector<8x128xf32>
    %cst_19 = arith.constant dense<0xFF800000> : vector<8xf32>
    %22 = vector.multi_reduction <maximumf>, %21, %cst_19 [1] : vector<8x128xf32> to vector<8xf32>
    %23 = vector.shape_cast %22 : vector<8xf32> to vector<8x1xf32>
    %24 = vector.broadcast %23 : vector<8x1xf32> to vector<8x128xf32>
    %25 = arith.subf %21, %24 : vector<8x128xf32>
    %26 = math.exp %25 : vector<8x128xf32>
    %cst_20 = arith.constant dense<0.000000e+00> : vector<8xf32>
    %27 = vector.multi_reduction <add>, %26, %cst_20 [1] : vector<8x128xf32> to vector<8xf32>
    %28 = vector.shape_cast %27 : vector<8xf32> to vector<8x1xf32>
    %29 = math.log %28 : vector<8x1xf32>
    %30 = vector.broadcast %29 : vector<8x1xf32> to vector<8x128xf32>
    %31 = arith.subf %25, %30 : vector<8x128xf32>
    %c0_21 = arith.constant 0 : index
    %c0_22 = arith.constant 0 : index
    %32 = vector.load %arg9[%c0_21, %c0_22] : memref<8x128xf32, #tpu.memory_space<vmem>>, vector<8x128xf32>
    tpu.vector_store %arg9[%c0_21, %c0_22], %31 {strides = array<i32>} : memref<8x128xf32, #tpu.memory_space<vmem>>, vector<8x128xf32>,
    return
  }
  func.func @transform_0(%arg0: i32) -> (i32, i32) {
    %c0_i32 = arith.constant 0 : i32
    %c0_i32_0 = arith.constant 0 : i32
    return %arg0, %c0_i32 : i32, i32
  }
  func.func @transform_1(%arg0: i32) -> (i32, i32) {
    %c0_i32 = arith.constant 0 : i32
    %c0_i32_0 = arith.constant 0 : i32
    return %arg0, %c0_i32 : i32, i32
  }
  func.func @transform_2(%arg0: i32) -> (i32, i32) {
    %c0_i32 = arith.constant 0 : i32
    %c0_i32_0 = arith.constant 0 : i32
    %c0_i32_1 = arith.constant 0 : i32
    return %c0_i32, %c0_i32_0 : i32, i32
  }
  func.func @transform_3(%arg0: i32) -> (i32, i32) {
    %c0_i32 = arith.constant 0 : i32
    %c0_i32_0 = arith.constant 0 : i32
    %c0_i32_1 = arith.constant 0 : i32
    return %c0_i32, %c0_i32_0 : i32, i32
  }
  func.func @transform_4(%arg0: i32) -> (i32, i32) {
    %c0_i32 = arith.constant 0 : i32
    %c0_i32_0 = arith.constant 0 : i32
    %c0_i32_1 = arith.constant 0 : i32
    return %c0_i32, %c0_i32_0 : i32, i32
  }
  func.func @transform_5(%arg0: i32) -> (i32, i32) {
    %c0_i32 = arith.constant 0 : i32
    %c0_i32_0 = arith.constant 0 : i32
    %c0_i32_1 = arith.constant 0 : i32
    return %c0_i32, %c0_i32_0 : i32, i32
  }
  func.func @transform_6(%arg0: i32) -> (i32, i32) {
    %c0_i32 = arith.constant 0 : i32
    %c0_i32_0 = arith.constant 0 : i32
    %c0_i32_1 = arith.constant 0 : i32
    return %c0_i32, %c0_i32_0 : i32, i32
  }
  func.func @transform_7(%arg0: i32) -> (i32, i32) {
    %c0_i32 = arith.constant 0 : i32
    %c0_i32_0 = arith.constant 0 : i32
    %c0_i32_1 = arith.constant 0 : i32
    return %c0_i32, %c0_i32_0 : i32, i32
  }
  func.func @transform_8(%arg0: i32) -> (i32, i32) {
    %c0_i32 = arith.constant 0 : i32
    %c0_i32_0 = arith.constant 0 : i32
    return %arg0, %c0_i32 : i32, i32
  }
}

</mosaic_0001>

<llo_original>
// kernel: minionn_fivelayer_forward.1
$region0: #{minionn_fivelayer_forward.1}
  #allocation0 [shape = 'u32[]', space=smem, size = 0x4, offset = 0x4, fixed_abs, tag = 'smem constant byte address 0x4 - core index']
  #allocation1 [shape = 'u32[72,128]{1,0:T(1,128)}', space=vmem, size = 0x9000, scoped, tag = 'internal scratch']
  %s0 = inlined_call_operand.vmem [shape: f32[8,784], index: 0, kind: input, shape index: {}]
  %s1 = inlined_call_operand.vmem [shape: f32[8,784], index: 1, kind: input, shape index: {}]
  %s2 = inlined_call_operand.hbm [shape: f32[784,1024], index: 2, kind: input, shape index: {}]
  %s3 = inlined_call_operand.hbm [shape: f32[1,1024], index: 3, kind: input, shape index: {}]
  %s4 = inlined_call_operand.hbm [shape: f32[1024,128], index: 4, kind: input, shape index: {}]
  %s5 = inlined_call_operand.hbm [shape: f32[1,128], index: 5, kind: input, shape index: {}]
  %s6 = inlined_call_operand.hbm [shape: f32[128,128], index: 6, kind: input, shape index: {}]
  %s7 = inlined_call_operand.hbm [shape: f32[1,128], index: 7, kind: input, shape index: {}]
  %s8 = inlined_call_operand.vmem [shape: f32[8,128], index: 8, kind: output, shape index: {}]
  %s9 = sld [smem:[#allocation0]]
  $region66: #{minionn_fivelayer_forward.1} parent=0
    _
  %s11 = ssub.s32 1, %s9
  %s12 = scalar_select 0, %s11, %s9
  $region1: #{minionn_fivelayer_forward.1} parent=0
    #allocation2 [shape = 'u8[3211264]{0}', space=vmem, size = 0x310000, scoped, tag = 'input window, operand 2, single buffered']
    #allocation3 [shape = 's32[1]{0}', space=sflag, size = 0x4, scoped, tag = 'scoped memory for minionn_fivelayer_forward.1']
    #allocation4 [shape = 'u8[4096]{0}', space=vmem, size = 0x1000, scoped, tag = 'input window, operand 3, single buffered']
    #allocation5 [shape = 's32[1]{0}', space=sflag, size = 0x4, scoped, tag = 'scoped memory for minionn_fivelayer_forward.1']
    #allocation6 [shape = 'u8[524288]{0}', space=vmem, size = 0x80000, scoped, tag = 'input window, operand 4, single buffered']
    #allocation7 [shape = 'u8[512]{0}', space=vmem, size = 0x400, scoped, tag = 'input window, operand 5, single buffered']
    #allocation8 [shape = 's32[1]{0}', space=sflag, size = 0x4, scoped, tag = 'scoped memory for minionn_fivelayer_forward.1']
    #allocation9 [shape = 'u8[65536]{0}', space=vmem, size = 0x10000, scoped, tag = 'input window, operand 6, single buffered']
    #allocation10 [shape = 'u8[512]{0}', space=vmem, size = 0x400, scoped, tag = 'input window, operand 7, single buffered']
    #allocation11 [shape = 's32[1]{0}', space=sflag, size = 0x4, scoped, tag = 'scoped memory for minionn_fivelayer_forward.1']
    %13 = vsyncpa [#allocation3], 0
    %14 = vsyncpa [#allocation5], 0
    %15 = vsyncpa [#allocation8], 0
    %16 = vsyncpa [#allocation11], 0
    // Predicated region
    $region2: #{minionn_fivelayer_forward.1} parent=1 // pred_check
      _
    $region3: #{minionn_fivelayer_forward.1} parent=1 // pred_check_branch
      %18 = sbr.rel (0) target = $region5
    $region4: #{minionn_fivelayer_forward.1} parent=1 // pred_region
      _
    $region5: #{minionn_fivelayer_forward.1} parent=1 // pred_fallthru
      _
    // Predicated region
    $region6: #{minionn_fivelayer_forward.1} parent=1 // pred_check
      _
    $region7: #{minionn_fivelayer_forward.1} parent=1 // pred_check_branch
      %20 = sbr.rel (0) target = $region9
    $region8: #{minionn_fivelayer_forward.1} parent=1 // pred_region
      _
    $region9: #{minionn_fivelayer_forward.1} parent=1 // pred_fallthru
      _
    // Predicated region
    $region10: #{minionn_fivelayer_forward.1} parent=1 // pred_check
      _
    $region11: #{minionn_fivelayer_forward.1} parent=1 // pred_check_branch
      %22 = sbr.rel (0) target = $region13
    $region12: #{minionn_fivelayer_forward.1} parent=1 // pred_region
      %24 = vsyncadd [#allocation3], 0
      %s25 = sshll.u32 %s2, 4
      %s26 = int_to_ptr.hbm [resolvable:$true] %s25
      %s27 = sshll.u32 [#allocation2], 4
      %s28 = int_to_ptr.vmem [resolvable:$true] %s27
      %33 = dma.hbm_to_vmem [thread:$0]  %s26, 100352, %s28, [#allocation3], 1024, 1024, 64
    $region13: #{minionn_fivelayer_forward.1} parent=1 // pred_fallthru
      _
    // Predicated region
    $region14: #{minionn_fivelayer_forward.1} parent=1 // pred_check
      _
    $region15: #{minionn_fivelayer_forward.1} parent=1 // pred_check_branch
      %35 = sbr.rel (0) target = $region17
    $region16: #{minionn_fivelayer_forward.1} parent=1 // pred_region
      %37 = vsyncadd [#allocation5], 0
      %s39 = sshll.u32 %s3, 4
      %s40 = int_to_ptr.hbm [resolvable:$true] %s39
      %s41 = sshll.u32 [#allocation4], 4
      %s42 = int_to_ptr.vmem [resolvable:$true] %s41
      %44 = dma.hbm_to_vmem [thread:$0]  %s40, 128, %s42, [#allocation5]
    $region17: #{minionn_fivelayer_forward.1} parent=1 // pred_fallthru
      _
    // Predicated region
    $region18: #{minionn_fivelayer_forward.1} parent=1 // pred_check
      _
    $region19: #{minionn_fivelayer_forward.1} parent=1 // pred_check_branch
      %46 = sbr.rel (0) target = $region21
    $region20: #{minionn_fivelayer_forward.1} parent=1 // pred_region
      %48 = vsyncadd [#allocation5], 0
      %s49 = sshll.u32 %s4, 4
      %s50 = int_to_ptr.hbm [resolvable:$true] %s49
      %s51 = sshll.u32 [#allocation6], 4
      %s52 = int_to_ptr.vmem [resolvable:$true] %s51
      %57 = dma.hbm_to_vmem [thread:$0]  %s50, 16384, %s52, [#allocation5], 128, 128, 8
    $region21: #{minionn_fivelayer_forward.1} parent=1 // pred_fallthru
      _
    // Predicated region
    $region22: #{minionn_fivelayer_forward.1} parent=1 // pred_check
      _
    $region23: #{minionn_fivelayer_forward.1} parent=1 // pred_check_branch
      %59 = sbr.rel (0) target = $region25
    $region24: #{minionn_fivelayer_forward.1} parent=1 // pred_region
      %61 = vsyncadd [#allocation8], 0
      %s63 = sshll.u32 %s5, 4
      %s64 = int_to_ptr.hbm [resolvable:$true] %s63
      %s65 = sshll.u32 [#allocation7], 4
      %s66 = int_to_ptr.vmem [resolvable:$true] %s65
      %68 = dma.hbm_to_vmem [thread:$0]  %s64, 16, %s66, [#allocation8]
    $region25: #{minionn_fivelayer_forward.1} parent=1 // pred_fallthru
      _
    // Predicated region
    $region26: #{minionn_fivelayer_forward.1} parent=1 // pred_check
      _
    $region27: #{minionn_fivelayer_forward.1} parent=1 // pred_check_branch
      %70 = sbr.rel (0) target = $region29
    $region28: #{minionn_fivelayer_forward.1} parent=1 // pred_region
      %72 = vsyncadd [#allocation8], 0
      %s73 = sshll.u32 %s6, 4
      %s74 = int_to_ptr.hbm [resolvable:$true] %s73
      %s75 = sshll.u32 [#allocation9], 4
      %s76 = int_to_ptr.vmem [resolvable:$true] %s75
      %81 = dma.hbm_to_vmem [thread:$0]  %s74, 2048, %s76, [#allocation8], 128, 128, 8
    $region29: #{minionn_fivelayer_forward.1} parent=1 // pred_fallthru
      _
    // Predicated region
    $region30: #{minionn_fivelayer_forward.1} parent=1 // pred_check
      _
    $region31: #{minionn_fivelayer_forward.1} parent=1 // pred_check_branch
      %83 = sbr.rel (0) target = $region33
    $region32: #{minionn_fivelayer_forward.1} parent=1 // pred_region
      %85 = vsyncadd [#allocation11], 0
      %s87 = sshll.u32 %s7, 4
      %s88 = int_to_ptr.hbm [resolvable:$true] %s87
      %s89 = sshll.u32 [#allocation10], 4
      %s90 = int_to_ptr.vmem [resolvable:$true] %s89
      %92 = dma.hbm_to_vmem [thread:$0]  %s88, 16, %s90, [#allocation11]
    $region33: #{minionn_fivelayer_forward.1} parent=1 // pred_fallthru
      _
    // Predicated region
    $region34: #{minionn_fivelayer_forward.1} parent=1 // pred_check
      _
    $region35: #{minionn_fivelayer_forward.1} parent=1 // pred_check_branch
      %94 = sbr.rel (0) target = $region37
    $region36: #{minionn_fivelayer_forward.1} parent=1 // pred_region
      %96 = dma.done [#allocation3], 100352
    $region37: #{minionn_fivelayer_forward.1} parent=1 // pred_fallthru
      _
    // Predicated region
    $region38: #{minionn_fivelayer_forward.1} parent=1 // pred_check
      _
    $region39: #{minionn_fivelayer_forward.1} parent=1 // pred_check_branch
      %98 = sbr.rel (0) target = $region41
    $region40: #{minionn_fivelayer_forward.1} parent=1 // pred_region
      %100 = dma.done [#allocation5], 128
    $region41: #{minionn_fivelayer_forward.1} parent=1 // pred_fallthru
      _
    // Predicated region
    $region42: #{minionn_fivelayer_forward.1} parent=1 // pred_check
      _
    $region43: #{minionn_fivelayer_forward.1} parent=1 // pred_check_branch
      %102 = sbr.rel (0) target = $region45
    $region44: #{minionn_fivelayer_forward.1} parent=1 // pred_region
      %104 = dma.done [#allocation5], 16384
    $region45: #{minionn_fivelayer_forward.1} parent=1 // pred_fallthru
      _
    // Predicated region
    $region46: #{minionn_fivelayer_forward.1} parent=1 // pred_check
      _
    $region47: #{minionn_fivelayer_forward.1} parent=1 // pred_check_branch
      %106 = sbr.rel (0) target = $region49
    $region48: #{minionn_fivelayer_forward.1} parent=1 // pred_region
      %108 = dma.done [#allocation8], 16
    $region49: #{minionn_fivelayer_forward.1} parent=1 // pred_fallthru
      _
    // Predicated region
    $region50: #{minionn_fivelayer_forward.1} parent=1 // pred_check
      _
    $region51: #{minionn_fivelayer_forward.1} parent=1 // pred_check_branch
      %110 = sbr.rel (0) target = $region53
    $region52: #{minionn_fivelayer_forward.1} parent=1 // pred_region
      %112 = dma.done [#allocation8], 2048
    $region53: #{minionn_fivelayer_forward.1} parent=1 // pred_fallthru
      _
    // Predicated region
    $region54: #{minionn_fivelayer_forward.1} parent=1 // pred_check
      _
    $region55: #{minionn_fivelayer_forward.1} parent=1 // pred_check_branch
      %114 = sbr.rel (0) target = $region57
    $region56: #{minionn_fivelayer_forward.1} parent=1 // pred_region
      %116 = dma.done [#allocation11], 16
    $region57: #{minionn_fivelayer_forward.1} parent=1 // pred_fallthru
      _
    %v117 = vld [vmem:[%s0] sm:$0xff]
    %v118 = vld [vmem:[%s0 + $0x8] sm:$0xff]
    %v119 = vld [vmem:[%s0 + $0x10] sm:$0xff]
    %v120 = vld [vmem:[%s0 + $0x18] sm:$0xff]
    %v121 = vld [vmem:[%s0 + $0x20] sm:$0xff]
    %v122 = vld [vmem:[%s0 + $0x28] sm:$0xff]
    %v123 = vld [vmem:[%s0 + $0x30] sm:$0xff]
    %v124 = vld [vmem:[%s1] sm:$0xff]
    %v125 = vld [vmem:[%s1 + $0x8] sm:$0xff]
    %v126 = vld [vmem:[%s1 + $0x10] sm:$0xff]
    %v127 = vld [vmem:[%s1 + $0x18] sm:$0xff]
    %v128 = vld [vmem:[%s1 + $0x20] sm:$0xff]
    %v129 = vld [vmem:[%s1 + $0x28] sm:$0xff]
    %v130 = vld [vmem:[%s1 + $0x30] sm:$0xff]
    %v131 = vadd.f32 %v117, %v124
    %v132 = vadd.f32 %v118, %v125
    %v133 = vadd.f32 %v119, %v126
    %v134 = vadd.f32 %v120, %v127
    %v135 = vadd.f32 %v121, %v128
    %v136 = vadd.f32 %v122, %v129
    %v137 = vadd.f32 %v123, %v130
    %v138 = vld [vmem:[#allocation2] sm:$0xff]
    %v139 = vld [vmem:[#allocation2 + $0x8] sm:$0xff]
    %v140 = vld [vmem:[#allocation2 + $0x10] sm:$0xff]
    %v141 = vld [vmem:[#allocation2 + $0x18] sm:$0xff]
    %v142 = vld [vmem:[#allocation2 + $0x20] sm:$0xff]
    %v143 = vld [vmem:[#allocation2 + $0x28] sm:$0xff]
    %v144 = vld [vmem:[#allocation2 + $0x30] sm:$0xff]
    %v145 = vld [vmem:[#allocation2 + $0x38] sm:$0xff]
    %v146 = vld [vmem:[#allocation2 + $0x40] sm:$0xff]
    %v147 = vld [vmem:[#allocation2 + $0x48] sm:$0xff]
    %v148 = vld [vmem:[#allocation2 + $0x50] sm:$0xff]
    %v149 = vld [vmem:[#allocation2 + $0x58] sm:$0xff]
    %v150 = vld [vmem:[#allocation2 + $0x60] sm:$0xff]
    %v151 = vld [vmem:[#allocation2 + $0x68] sm:$0xff]
    %v152 = vld [vmem:[#allocation2 + $0x70] sm:$0xff]
    %v153 = vld [vmem:[#allocation2 + $0x78] sm:$0xff]
    %v154 = vld [vmem:[#allocation2 + $0x80] sm:$0xff]
    %v155 = vld [vmem:[#allocation2 + $0x88] sm:$0xff]
    %v156 = vld [vmem:[#allocation2 + $0x90] sm:$0xff]
    %v157 = vld [vmem:[#allocation2 + $0x98] sm:$0xff]
    %v158 = vld [vmem:[#allocation2 + $0xa0] sm:$0xff]
    %v159 = vld [vmem:[#allocation2 + $0xa8] sm:$0xff]
    %v160 = vld [vmem:[#allocation2 + $0xb0] sm:$0xff]
    %v161 = vld [vmem:[#allocation2 + $0xb8] sm:$0xff]
    %v162 = vld [vmem:[#allocation2 + $0xc0] sm:$0xff]
    %v163 = vld [vmem:[#allocation2 + $0xc8] sm:$0xff]
    %v164 = vld [vmem:[#allocation2 + $0xd0] sm:$0xff]
    %v165 = vld [vmem:[#allocation2 + $0xd8] sm:$0xff]
    %v166 = vld [vmem:[#allocation2 + $0xe0] sm:$0xff]
    %v167 = vld [vmem:[#allocation2 + $0xe8] sm:$0xff]
    %v168 = vld [vmem:[#allocation2 + $0xf0] sm:$0xff]
    %v169 = vld [vmem:[#allocation2 + $0xf8] sm:$0xff]
    %v170 = vld [vmem:[#allocation2 + $0x100] sm:$0xff]
    %v171 = vld [vmem:[#allocation2 + $0x108] sm:$0xff]
    %v172 = vld [vmem:[#allocation2 + $0x110] sm:$0xff]
    %v173 = vld [vmem:[#allocation2 + $0x118] sm:$0xff]
    %v174 = vld [vmem:[#allocation2 + $0x120] sm:$0xff]
    %v175 = vld [vmem:[#allocation2 + $0x128] sm:$0xff]
    %v176 = vld [vmem:[#allocation2 + $0x130] sm:$0xff]
    %v177 = vld [vmem:[#allocation2 + $0x138] sm:$0xff]
    %v178 = vld [vmem:[#allocation2 + $0x140] sm:$0xff]
    %v179 = vld [vmem:[#allocation2 + $0x148] sm:$0xff]
    %v180 = vld [vmem:[#allocation2 + $0x150] sm:$0xff]
    %v181 = vld [vmem:[#allocation2 + $0x158] sm:$0xff]
    %v182 = vld [vmem:[#allocation2 + $0x160] sm:$0xff]
    %v183 = vld [vmem:[#allocation2 + $0x168] sm:$0xff]
    %v184 = vld [vmem:[#allocation2 + $0x170] sm:$0xff]
    %v185 = vld [vmem:[#allocation2 + $0x178] sm:$0xff]
    %v186 = vld [vmem:[#allocation2 + $0x180] sm:$0xff]
    %v187 = vld [vmem:[#allocation2 + $0x188] sm:$0xff]
    %v188 = vld [vmem:[#allocation2 + $0x190] sm:$0xff]
    %v189 = vld [vmem:[#allocation2 + $0x198] sm:$0xff]
    %v190 = vld [vmem:[#allocation2 + $0x1a0] sm:$0xff]
    %v191 = vld [vmem:[#allocation2 + $0x1a8] sm:$0xff]
    %v192 = vld [vmem:[#allocation2 + $0x1b0] sm:$0xff]
    %v193 = vld [vmem:[#allocation2 + $0x1b8] sm:$0xff]
    %v194 = vld [vmem:[#allocation2 + $0x1c0] sm:$0xff]
    %v195 = vld [vmem:[#allocation2 + $0x1c8] sm:$0xff]
    %v196 = vld [vmem:[#allocation2 + $0x1d0] sm:$0xff]
    %v197 = vld [vmem:[#allocation2 + $0x1d8] sm:$0xff]
    %v198 = vld [vmem:[#allocation2 + $0x1e0] sm:$0xff]
    %v199 = vld [vmem:[#allocation2 + $0x1e8] sm:$0xff]
    %v200 = vld [vmem:[#allocation2 + $0x1f0] sm:$0xff]
    %v201 = vld [vmem:[#allocation2 + $0x1f8] sm:$0xff]
    %v202 = vld [vmem:[#allocation2 + $0x200] sm:$0xff]
    %v203 = vld [vmem:[#allocation2 + $0x208] sm:$0xff]
    %v204 = vld [vmem:[#allocation2 + $0x210] sm:$0xff]
    %v205 = vld [vmem:[#allocation2 + $0x218] sm:$0xff]
    %v206 = vld [vmem:[#allocation2 + $0x220] sm:$0xff]
    %v207 = vld [vmem:[#allocation2 + $0x228] sm:$0xff]
    %v208 = vld [vmem:[#allocation2 + $0x230] sm:$0xff]
    %v209 = vld [vmem:[#allocation2 + $0x238] sm:$0xff]
    %v210 = vld [vmem:[#allocation2 + $0x240] sm:$0xff]
    %v211 = vld [vmem:[#allocation2 + $0x248] sm:$0xff]
    %v212 = vld [vmem:[#allocation2 + $0x250] sm:$0xff]
    %v213 = vld [vmem:[#allocation2 + $0x258] sm:$0xff]
    %v214 = vld [vmem:[#allocation2 + $0x260] sm:$0xff]
    %v215 = vld [vmem:[#allocation2 + $0x268] sm:$0xff]
    %v216 = vld [vmem:[#allocation2 + $0x270] sm:$0xff]
    %v217 = vld [vmem:[#allocation2 + $0x278] sm:$0xff]
    %v218 = vld [vmem:[#allocation2 + $0x280] sm:$0xff]
    %v219 = vld [vmem:[#allocation2 + $0x288] sm:$0xff]
    %v220 = vld [vmem:[#allocation2 + $0x290] sm:$0xff]
    %v221 = vld [vmem:[#allocation2 + $0x298] sm:$0xff]
    %v222 = vld [vmem:[#allocation2 + $0x2a0] sm:$0xff]
    %v223 = vld [vmem:[#allocation2 + $0x2a8] sm:$0xff]
    %v224 = vld [vmem:[#allocation2 + $0x2b0] sm:$0xff]
    %v225 = vld [vmem:[#allocation2 + $0x2b8] sm:$0xff]
    %v226 = vld [vmem:[#allocation2 + $0x2c0] sm:$0xff]
    %v227 = vld [vmem:[#allocation2 + $0x2c8] sm:$0xff]
    %v228 = vld [vmem:[#allocation2 + $0x2d0] sm:$0xff]
    %v229 = vld [vmem:[#allocation2 + $0x2d8] sm:$0xff]
    %v230 = vld [vmem:[#allocation2 + $0x2e0] sm:$0xff]
    %v231 = vld [vmem:[#allocation2 + $0x2e8] sm:$0xff]
    %v232 = vld [vmem:[#allocation2 + $0x2f0] sm:$0xff]
    %v233 = vld [vmem:[#allocation2 + $0x2f8] sm:$0xff]
    %v234 = vld [vmem:[#allocation2 + $0x300] sm:$0xff]
    %v235 = vld [vmem:[#allocation2 + $0x308] sm:$0xff]
    %v236 = vld [vmem:[#allocation2 + $0x310] sm:$0xff]
    %v237 = vld [vmem:[#allocation2 + $0x318] sm:$0xff]
    %v238 = vld [vmem:[#allocation2 + $0x320] sm:$0xff]
    %v239 = vld [vmem:[#allocation2 + $0x328] sm:$0xff]
    %v240 = vld [vmem:[#allocation2 + $0x330] sm:$0xff]
    %v241 = vld [vmem:[#allocation2 + $0x338] sm:$0xff]
    %v242 = vld [vmem:[#allocation2 + $0x340] sm:$0xff]
    %v243 = vld [vmem:[#allocation2 + $0x348] sm:$0xff]
    %v244 = vld [vmem:[#allocation2 + $0x350] sm:$0xff]
    %v245 = vld [vmem:[#allocation2 + $0x358] sm:$0xff]
    %v246 = vld [vmem:[#allocation2 + $0x360] sm:$0xff]
    %v247 = vld [vmem:[#allocation2 + $0x368] sm:$0xff]
    %v248 = vld [vmem:[#allocation2 + $0x370] sm:$0xff]
    %v249 = vld [vmem:[#allocation2 + $0x378] sm:$0xff]
    %v250 = vld [vmem:[#allocation2 + $0x380] sm:$0xff]
    %v251 = vld [vmem:[#allocation2 + $0x388] sm:$0xff]
    %v252 = vld [vmem:[#allocation2 + $0x390] sm:$0xff]
    %v253 = vld [vmem:[#allocation2 + $0x398] sm:$0xff]
    %v254 = vld [vmem:[#allocation2 + $0x3a0] sm:$0xff]
    %v255 = vld [vmem:[#allocation2 + $0x3a8] sm:$0xff]
    %v256 = vld [vmem:[#allocation2 + $0x3b0] sm:$0xff]
    %v257 = vld [vmem:[#allocation2 + $0x3b8] sm:$0xff]
    %v258 = vld [vmem:[#allocation2 + $0x3c0] sm:$0xff]
    %v259 = vld [vmem:[#allocation2 + $0x3c8] sm:$0xff]
    %v260 = vld [vmem:[#allocation2 + $0x3d0] sm:$0xff]
    %v261 = vld [vmem:[#allocation2 + $0x3d8] sm:$0xff]
    %v262 = vld [vmem:[#allocation2 + $0x3e0] sm:$0xff]
    %v263 = vld [vmem:[#allocation2 + $0x3e8] sm:$0xff]
    %v264 = vld [vmem:[#allocation2 + $0x3f0] sm:$0xff]
    %v265 = vld [vmem:[#allocation2 + $0x3f8] sm:$0xff]
    %v266 = vld [vmem:[#allocation2 + $0x400] sm:$0xff]
    %v267 = vld [vmem:[#allocation2 + $0x408] sm:$0xff]
    %v268 = vld [vmem:[#allocation2 + $0x410] sm:$0xff]
    %v269 = vld [vmem:[#allocation2 + $0x418] sm:$0xff]
    %v270 = vld [vmem:[#allocation2 + $0x420] sm:$0xff]
    %v271 = vld [vmem:[#allocation2 + $0x428] sm:$0xff]
    %v272 = vld [vmem:[#allocation2 + $0x430] sm:$0xff]
    %v273 = vld [vmem:[#allocation2 + $0x438] sm:$0xff]
    %v274 = vld [vmem:[#allocation2 + $0x440] sm:$0xff]
    %v275 = vld [vmem:[#allocation2 + $0x448] sm:$0xff]
    %v276 = vld [vmem:[#allocation2 + $0x450] sm:$0xff]
    %v277 = vld [vmem:[#allocation2 + $0x458] sm:$0xff]
    %v278 = vld [vmem:[#allocation2 + $0x460] sm:$0xff]
    %v279 = vld [vmem:[#allocation2 + $0x468] sm:$0xff]
    %v280 = vld [vmem:[#allocation2 + $0x470] sm:$0xff]
    %v281 = vld [vmem:[#allocation2 + $0x478] sm:$0xff]
    %v282 = vld [vmem:[#allocation2 + $0x480] sm:$0xff]
    %v283 = vld [vmem:[#allocation2 + $0x488] sm:$0xff]
    %v284 = vld [vmem:[#allocation2 + $0x490] sm:$0xff]
    %v285 = vld [vmem:[#allocation2 + $0x498] sm:$0xff]
    %v286 = vld [vmem:[#allocation2 + $0x4a0] sm:$0xff]
    %v287 = vld [vmem:[#allocation2 + $0x4a8] sm:$0xff]
    %v288 = vld [vmem:[#allocation2 + $0x4b0] sm:$0xff]
    %v289 = vld [vmem:[#allocation2 + $0x4b8] sm:$0xff]
    %v290 = vld [vmem:[#allocation2 + $0x4c0] sm:$0xff]
    %v291 = vld [vmem:[#allocation2 + $0x4c8] sm:$0xff]
    %v292 = vld [vmem:[#allocation2 + $0x4d0] sm:$0xff]
    %v293 = vld [vmem:[#allocation2 + $0x4d8] sm:$0xff]
    %v294 = vld [vmem:[#allocation2 + $0x4e0] sm:$0xff]
    %v295 = vld [vmem:[#allocation2 + $0x4e8] sm:$0xff]
    %v296 = vld [vmem:[#allocation2 + $0x4f0] sm:$0xff]
    %v297 = vld [vmem:[#allocation2 + $0x4f8] sm:$0xff]
    %v298 = vld [vmem:[#allocation2 + $0x500] sm:$0xff]
    %v299 = vld [vmem:[#allocation2 + $0x508] sm:$0xff]
    %v300 = vld [vmem:[#allocation2 + $0x510] sm:$0xff]
    %v301 = vld [vmem:[#allocation2 + $0x518] sm:$0xff]
    %v302 = vld [vmem:[#allocation2 + $0x520] sm:$0xff]
    %v303 = vld [vmem:[#allocation2 + $0x528] sm:$0xff]
    %v304 = vld [vmem:[#allocation2 + $0x530] sm:$0xff]
    %v305 = vld [vmem:[#allocation2 + $0x538] sm:$0xff]
    %v306 = vld [vmem:[#allocation2 + $0x540] sm:$0xff]
    %v307 = vld [vmem:[#allocation2 + $0x548] sm:$0xff]
    %v308 = vld [vmem:[#allocation2 + $0x550] sm:$0xff]
    %v309 = vld [vmem:[#allocation2 + $0x558] sm:$0xff]
    %v310 = vld [vmem:[#allocation2 + $0x560] sm:$0xff]
    %v311 = vld [vmem:[#allocation2 + $0x568] sm:$0xff]
    %v312 = vld [vmem:[#allocation2 + $0x570] sm:$0xff]
    %v313 = vld [vmem:[#allocation2 + $0x578] sm:$0xff]
    %v314 = vld [vmem:[#allocation2 + $0x580] sm:$0xff]
    %v315 = vld [vmem:[#allocation2 + $0x588] sm:$0xff]
    %v316 = vld [vmem:[#allocation2 + $0x590] sm:$0xff]
    %v317 = vld [vmem:[#allocation2 + $0x598] sm:$0xff]
    %v318 = vld [vmem:[#allocation2 + $0x5a0] sm:$0xff]
    %v319 = vld [vmem:[#allocation2 + $0x5a8] sm:$0xff]
    %v320 = vld [vmem:[#allocation2 + $0x5b0] sm:$0xff]
    %v321 = vld [vmem:[#allocation2 + $0x5b8] sm:$0xff]
    %v322 = vld [vmem:[#allocation2 + $0x5c0] sm:$0xff]
    %v323 = vld [vmem:[#allocation2 + $0x5c8] sm:$0xff]
    %v324 = vld [vmem:[#allocation2 + $0x5d0] sm:$0xff]
    %v325 = vld [vmem:[#allocation2 + $0x5d8] sm:$0xff]
    %v326 = vld [vmem:[#allocation2 + $0x5e0] sm:$0xff]
    %v327 = vld [vmem:[#allocation2 + $0x5e8] sm:$0xff]
    %v328 = vld [vmem:[#allocation2 + $0x5f0] sm:$0xff]
    %v329 = vld [vmem:[#allocation2 + $0x5f8] sm:$0xff]
    %v330 = vld [vmem:[#allocation2 + $0x600] sm:$0xff]
    %v331 = vld [vmem:[#allocation2 + $0x608] sm:$0xff]
    %v332 = vld [vmem:[#allocation2 + $0x610] sm:$0xff]
    %v333 = vld [vmem:[#allocation2 + $0x618] sm:$0xff]
    %v334 = vld [vmem:[#allocation2 + $0x620] sm:$0xff]
    %v335 = vld [vmem:[#allocation2 + $0x628] sm:$0xff]
    %v336 = vld [vmem:[#allocation2 + $0x630] sm:$0xff]
    %v337 = vld [vmem:[#allocation2 + $0x638] sm:$0xff]
    %v338 = vld [vmem:[#allocation2 + $0x640] sm:$0xff]
    %v339 = vld [vmem:[#allocation2 + $0x648] sm:$0xff]
    %v340 = vld [vmem:[#allocation2 + $0x650] sm:$0xff]
    %v341 = vld [vmem:[#allocation2 + $0x658] sm:$0xff]
    %v342 = vld [vmem:[#allocation2 + $0x660] sm:$0xff]
    %v343 = vld [vmem:[#allocation2 + $0x668] sm:$0xff]
    %v344 = vld [vmem:[#allocation2 + $0x670] sm:$0xff]
    %v345 = vld [vmem:[#allocation2 + $0x678] sm:$0xff]
    %v346 = vld [vmem:[#allocation2 + $0x680] sm:$0xff]
    %v347 = vld [vmem:[#allocation2 + $0x688] sm:$0xff]
    %v348 = vld [vmem:[#allocation2 + $0x690] sm:$0xff]
    %v349 = vld [vmem:[#allocation2 + $0x698] sm:$0xff]
    %v350 = vld [vmem:[#allocation2 + $0x6a0] sm:$0xff]
    %v351 = vld [vmem:[#allocation2 + $0x6a8] sm:$0xff]
    %v352 = vld [vmem:[#allocation2 + $0x6b0] sm:$0xff]
    %v353 = vld [vmem:[#allocation2 + $0x6b8] sm:$0xff]
    %v354 = vld [vmem:[#allocation2 + $0x6c0] sm:$0xff]
    %v355 = vld [vmem:[#allocation2 + $0x6c8] sm:$0xff]
    %v356 = vld [vmem:[#allocation2 + $0x6d0] sm:$0xff]
    %v357 = vld [vmem:[#allocation2 + $0x6d8] sm:$0xff]
    %v358 = vld [vmem:[#allocation2 + $0x6e0] sm:$0xff]
    %v359 = vld [vmem:[#allocation2 + $0x6e8] sm:$0xff]
    %v360 = vld [vmem:[#allocation2 + $0x6f0] sm:$0xff]
    %v361 = vld [vmem:[#allocation2 + $0x6f8] sm:$0xff]
    %v362 = vld [vmem:[#allocation2 + $0x700] sm:$0xff]
    %v363 = vld [vmem:[#allocation2 + $0x708] sm:$0xff]
    %v364 = vld [vmem:[#allocation2 + $0x710] sm:$0xff]
    %v365 = vld [vmem:[#allocation2 + $0x718] sm:$0xff]
    %v366 = vld [vmem:[#allocation2 + $0x720] sm:$0xff]
    %v367 = vld [vmem:[#allocation2 + $0x728] sm:$0xff]
    %v368 = vld [vmem:[#allocation2 + $0x730] sm:$0xff]
    %v369 = vld [vmem:[#allocation2 + $0x738] sm:$0xff]
    %v370 = vld [vmem:[#allocation2 + $0x740] sm:$0xff]
    %v371 = vld [vmem:[#allocation2 + $0x748] sm:$0xff]
    %v372 = vld [vmem:[#allocation2 + $0x750] sm:$0xff]
    %v373 = vld [vmem:[#allocation2 + $0x758] sm:$0xff]
    %v374 = vld [vmem:[#allocation2 + $0x760] sm:$0xff]
    %v375 = vld [vmem:[#allocation2 + $0x768] sm:$0xff]
    %v376 = vld [vmem:[#allocation2 + $0x770] sm:$0xff]
    %v377 = vld [vmem:[#allocation2 + $0x778] sm:$0xff]
    %v378 = vld [vmem:[#allocation2 + $0x780] sm:$0xff]
    %v379 = vld [vmem:[#allocation2 + $0x788] sm:$0xff]
    %v380 = vld [vmem:[#allocation2 + $0x790] sm:$0xff]
    %v381 = vld [vmem:[#allocation2 + $0x798] sm:$0xff]
    %v382 = vld [vmem:[#allocation2 + $0x7a0] sm:$0xff]
    %v383 = vld [vmem:[#allocation2 + $0x7a8] sm:$0xff]
    %v384 = vld [vmem:[#allocation2 + $0x7b0] sm:$0xff]
    %v385 = vld [vmem:[#allocation2 + $0x7b8] sm:$0xff]
    %v386 = vld [vmem:[#allocation2 + $0x7c0] sm:$0xff]
    %v387 = vld [vmem:[#allocation2 + $0x7c8] sm:$0xff]
    %v388 = vld [vmem:[#allocation2 + $0x7d0] sm:$0xff]
    %v389 = vld [vmem:[#allocation2 + $0x7d8] sm:$0xff]
    %v390 = vld [vmem:[#allocation2 + $0x7e0] sm:$0xff]
    %v391 = vld [vmem:[#allocation2 + $0x7e8] sm:$0xff]
    %v392 = vld [vmem:[#allocation2 + $0x7f0] sm:$0xff]
    %v393 = vld [vmem:[#allocation2 + $0x7f8] sm:$0xff]
    %v394 = vld [vmem:[#allocation2 + $0x800] sm:$0xff]
    %v395 = vld [vmem:[#allocation2 + $0x808] sm:$0xff]
    %v396 = vld [vmem:[#allocation2 + $0x810] sm:$0xff]
    %v397 = vld [vmem:[#allocation2 + $0x818] sm:$0xff]
    %v398 = vld [vmem:[#allocation2 + $0x820] sm:$0xff]
    %v399 = vld [vmem:[#allocation2 + $0x828] sm:$0xff]
    %v400 = vld [vmem:[#allocation2 + $0x830] sm:$0xff]
    %v401 = vld [vmem:[#allocation2 + $0x838] sm:$0xff]
    %v402 = vld [vmem:[#allocation2 + $0x840] sm:$0xff]
    %v403 = vld [vmem:[#allocation2 + $0x848] sm:$0xff]
    %v404 = vld [vmem:[#allocation2 + $0x850] sm:$0xff]
    %v405 = vld [vmem:[#allocation2 + $0x858] sm:$0xff]
    %v406 = vld [vmem:[#allocation2 + $0x860] sm:$0xff]
    %v407 = vld [vmem:[#allocation2 + $0x868] sm:$0xff]
    %v408 = vld [vmem:[#allocation2 + $0x870] sm:$0xff]
    %v409 = vld [vmem:[#allocation2 + $0x878] sm:$0xff]
    %v410 = vld [vmem:[#allocation2 + $0x880] sm:$0xff]
    %v411 = vld [vmem:[#allocation2 + $0x888] sm:$0xff]
    %v412 = vld [vmem:[#allocation2 + $0x890] sm:$0xff]
    %v413 = vld [vmem:[#allocation2 + $0x898] sm:$0xff]
    %v414 = vld [vmem:[#allocation2 + $0x8a0] sm:$0xff]
    %v415 = vld [vmem:[#allocation2 + $0x8a8] sm:$0xff]
    %v416 = vld [vmem:[#allocation2 + $0x8b0] sm:$0xff]
    %v417 = vld [vmem:[#allocation2 + $0x8b8] sm:$0xff]
    %v418 = vld [vmem:[#allocation2 + $0x8c0] sm:$0xff]
    %v419 = vld [vmem:[#allocation2 + $0x8c8] sm:$0xff]
    %v420 = vld [vmem:[#allocation2 + $0x8d0] sm:$0xff]
    %v421 = vld [vmem:[#allocation2 + $0x8d8] sm:$0xff]
    %v422 = vld [vmem:[#allocation2 + $0x8e0] sm:$0xff]
    %v423 = vld [vmem:[#allocation2 + $0x8e8] sm:$0xff]
    %v424 = vld [vmem:[#allocation2 + $0x8f0] sm:$0xff]
    %v425 = vld [vmem:[#allocation2 + $0x8f8] sm:$0xff]
    %v426 = vld [vmem:[#allocation2 + $0x900] sm:$0xff]
    %v427 = vld [vmem:[#allocation2 + $0x908] sm:$0xff]
    %v428 = vld [vmem:[#allocation2 + $0x910] sm:$0xff]
    %v429 = vld [vmem:[#allocation2 + $0x918] sm:$0xff]
    %v430 = vld [vmem:[#allocation2 + $0x920] sm:$0xff]
    %v431 = vld [vmem:[#allocation2 + $0x928] sm:$0xff]
    %v432 = vld [vmem:[#allocation2 + $0x930] sm:$0xff]
    %v433 = vld [vmem:[#allocation2 + $0x938] sm:$0xff]
    %v434 = vld [vmem:[#allocation2 + $0x940] sm:$0xff]
    %v435 = vld [vmem:[#allocation2 + $0x948] sm:$0xff]
    %v436 = vld [vmem:[#allocation2 + $0x950] sm:$0xff]
    %v437 = vld [vmem:[#allocation2 + $0x958] sm:$0xff]
    %v438 = vld [vmem:[#allocation2 + $0x960] sm:$0xff]
    %v439 = vld [vmem:[#allocation2 + $0x968] sm:$0xff]
    %v440 = vld [vmem:[#allocation2 + $0x970] sm:$0xff]
    %v441 = vld [vmem:[#allocation2 + $0x978] sm:$0xff]
    %v442 = vld [vmem:[#allocation2 + $0x980] sm:$0xff]
    %v443 = vld [vmem:[#allocation2 + $0x988] sm:$0xff]
    %v444 = vld [vmem:[#allocation2 + $0x990] sm:$0xff]
    %v445 = vld [vmem:[#allocation2 + $0x998] sm:$0xff]
    %v446 = vld [vmem:[#allocation2 + $0x9a0] sm:$0xff]
    %v447 = vld [vmem:[#allocation2 + $0x9a8] sm:$0xff]
    %v448 = vld [vmem:[#allocation2 + $0x9b0] sm:$0xff]
    %v449 = vld [vmem:[#allocation2 + $0x9b8] sm:$0xff]
    %v450 = vld [vmem:[#allocation2 + $0x9c0] sm:$0xff]
    %v451 = vld [vmem:[#allocation2 + $0x9c8] sm:$0xff]
    %v452 = vld [vmem:[#allocation2 + $0x9d0] sm:$0xff]
    %v453 = vld [vmem:[#allocation2 + $0x9d8] sm:$0xff]
    %v454 = vld [vmem:[#allocation2 + $0x9e0] sm:$0xff]
    %v455 = vld [vmem:[#allocation2 + $0x9e8] sm:$0xff]
    %v456 = vld [vmem:[#allocation2 + $0x9f0] sm:$0xff]
    %v457 = vld [vmem:[#allocation2 + $0x9f8] sm:$0xff]
    %v458 = vld [vmem:[#allocation2 + $0xa00] sm:$0xff]
    %v459 = vld [vmem:[#allocation2 + $0xa08] sm:$0xff]
    %v460 = vld [vmem:[#allocation2 + $0xa10] sm:$0xff]
    %v461 = vld [vmem:[#allocation2 + $0xa18] sm:$0xff]
    %v462 = vld [vmem:[#allocation2 + $0xa20] sm:$0xff]
    %v463 = vld [vmem:[#allocation2 + $0xa28] sm:$0xff]
    %v464 = vld [vmem:[#allocation2 + $0xa30] sm:$0xff]
    %v465 = vld [vmem:[#allocation2 + $0xa38] sm:$0xff]
    %v466 = vld [vmem:[#allocation2 + $0xa40] sm:$0xff]
    %v467 = vld [vmem:[#allocation2 + $0xa48] sm:$0xff]
    %v468 = vld [vmem:[#allocation2 + $0xa50] sm:$0xff]
    %v469 = vld [vmem:[#allocation2 + $0xa58] sm:$0xff]
    %v470 = vld [vmem:[#allocation2 + $0xa60] sm:$0xff]
    %v471 = vld [vmem:[#allocation2 + $0xa68] sm:$0xff]
    %v472 = vld [vmem:[#allocation2 + $0xa70] sm:$0xff]
    %v473 = vld [vmem:[#allocation2 + $0xa78] sm:$0xff]
    %v474 = vld [vmem:[#allocation2 + $0xa80] sm:$0xff]
    %v475 = vld [vmem:[#allocation2 + $0xa88] sm:$0xff]
    %v476 = vld [vmem:[#allocation2 + $0xa90] sm:$0xff]
    %v477 = vld [vmem:[#allocation2 + $0xa98] sm:$0xff]
    %v478 = vld [vmem:[#allocation2 + $0xaa0] sm:$0xff]
    %v479 = vld [vmem:[#allocation2 + $0xaa8] sm:$0xff]
    %v480 = vld [vmem:[#allocation2 + $0xab0] sm:$0xff]
    %v481 = vld [vmem:[#allocation2 + $0xab8] sm:$0xff]
    %v482 = vld [vmem:[#allocation2 + $0xac0] sm:$0xff]
    %v483 = vld [vmem:[#allocation2 + $0xac8] sm:$0xff]
    %v484 = vld [vmem:[#allocation2 + $0xad0] sm:$0xff]
    %v485 = vld [vmem:[#allocation2 + $0xad8] sm:$0xff]
    %v486 = vld [vmem:[#allocation2 + $0xae0] sm:$0xff]
    %v487 = vld [vmem:[#allocation2 + $0xae8] sm:$0xff]
    %v488 = vld [vmem:[#allocation2 + $0xaf0] sm:$0xff]
    %v489 = vld [vmem:[#allocation2 + $0xaf8] sm:$0xff]
    %v490 = vld [vmem:[#allocation2 + $0xb00] sm:$0xff]
    %v491 = vld [vmem:[#allocation2 + $0xb08] sm:$0xff]
    %v492 = vld [vmem:[#allocation2 + $0xb10] sm:$0xff]
    %v493 = vld [vmem:[#allocation2 + $0xb18] sm:$0xff]
    %v494 = vld [vmem:[#allocation2 + $0xb20] sm:$0xff]
    %v495 = vld [vmem:[#allocation2 + $0xb28] sm:$0xff]
    %v496 = vld [vmem:[#allocation2 + $0xb30] sm:$0xff]
    %v497 = vld [vmem:[#allocation2 + $0xb38] sm:$0xff]
    %v498 = vld [vmem:[#allocation2 + $0xb40] sm:$0xff]
    %v499 = vld [vmem:[#allocation2 + $0xb48] sm:$0xff]
    %v500 = vld [vmem:[#allocation2 + $0xb50] sm:$0xff]
    %v501 = vld [vmem:[#allocation2 + $0xb58] sm:$0xff]
    %v502 = vld [vmem:[#allocation2 + $0xb60] sm:$0xff]
    %v503 = vld [vmem:[#allocation2 + $0xb68] sm:$0xff]
    %v504 = vld [vmem:[#allocation2 + $0xb70] sm:$0xff]
    %v505 = vld [vmem:[#allocation2 + $0xb78] sm:$0xff]
    %v506 = vld [vmem:[#allocation2 + $0xb80] sm:$0xff]
    %v507 = vld [vmem:[#allocation2 + $0xb88] sm:$0xff]
    %v508 = vld [vmem:[#allocation2 + $0xb90] sm:$0xff]
    %v509 = vld [vmem:[#allocation2 + $0xb98] sm:$0xff]
    %v510 = vld [vmem:[#allocation2 + $0xba0] sm:$0xff]
    %v511 = vld [vmem:[#allocation2 + $0xba8] sm:$0xff]
    %v512 = vld [vmem:[#allocation2 + $0xbb0] sm:$0xff]
    %v513 = vld [vmem:[#allocation2 + $0xbb8] sm:$0xff]
    %v514 = vld [vmem:[#allocation2 + $0xbc0] sm:$0xff]
    %v515 = vld [vmem:[#allocation2 + $0xbc8] sm:$0xff]
    %v516 = vld [vmem:[#allocation2 + $0xbd0] sm:$0xff]
    %v517 = vld [vmem:[#allocation2 + $0xbd8] sm:$0xff]
    %v518 = vld [vmem:[#allocation2 + $0xbe0] sm:$0xff]
    %v519 = vld [vmem:[#allocation2 + $0xbe8] sm:$0xff]
    %v520 = vld [vmem:[#allocation2 + $0xbf0] sm:$0xff]
    %v521 = vld [vmem:[#allocation2 + $0xbf8] sm:$0xff]
    %v522 = vld [vmem:[#allocation2 + $0xc00] sm:$0xff]
    %v523 = vld [vmem:[#allocation2 + $0xc08] sm:$0xff]
    %v524 = vld [vmem:[#allocation2 + $0xc10] sm:$0xff]
    %v525 = vld [vmem:[#allocation2 + $0xc18] sm:$0xff]
    %v526 = vld [vmem:[#allocation2 + $0xc20] sm:$0xff]
    %v527 = vld [vmem:[#allocation2 + $0xc28] sm:$0xff]
    %v528 = vld [vmem:[#allocation2 + $0xc30] sm:$0xff]
    %v529 = vld [vmem:[#allocation2 + $0xc38] sm:$0xff]
    %v530 = vld [vmem:[#allocation2 + $0xc40] sm:$0xff]
    %v531 = vld [vmem:[#allocation2 + $0xc48] sm:$0xff]
    %v532 = vld [vmem:[#allocation2 + $0xc50] sm:$0xff]
    %v533 = vld [vmem:[#allocation2 + $0xc58] sm:$0xff]
    %v534 = vld [vmem:[#allocation2 + $0xc60] sm:$0xff]
    %v535 = vld [vmem:[#allocation2 + $0xc68] sm:$0xff]
    %v536 = vld [vmem:[#allocation2 + $0xc70] sm:$0xff]
    %v537 = vld [vmem:[#allocation2 + $0xc78] sm:$0xff]
    %v538 = vld [vmem:[#allocation2 + $0xc80] sm:$0xff]
    %v539 = vld [vmem:[#allocation2 + $0xc88] sm:$0xff]
    %v540 = vld [vmem:[#allocation2 + $0xc90] sm:$0xff]
    %v541 = vld [vmem:[#allocation2 + $0xc98] sm:$0xff]
    %v542 = vld [vmem:[#allocation2 + $0xca0] sm:$0xff]
    %v543 = vld [vmem:[#allocation2 + $0xca8] sm:$0xff]
    %v544 = vld [vmem:[#allocation2 + $0xcb0] sm:$0xff]
    %v545 = vld [vmem:[#allocation2 + $0xcb8] sm:$0xff]
    %v546 = vld [vmem:[#allocation2 + $0xcc0] sm:$0xff]
    %v547 = vld [vmem:[#allocation2 + $0xcc8] sm:$0xff]
    %v548 = vld [vmem:[#allocation2 + $0xcd0] sm:$0xff]
    %v549 = vld [vmem:[#allocation2 + $0xcd8] sm:$0xff]
    %v550 = vld [vmem:[#allocation2 + $0xce0] sm:$0xff]
    %v551 = vld [vmem:[#allocation2 + $0xce8] sm:$0xff]
    %v552 = vld [vmem:[#allocation2 + $0xcf0] sm:$0xff]
    %v553 = vld [vmem:[#allocation2 + $0xcf8] sm:$0xff]
    %v554 = vld [vmem:[#allocation2 + $0xd00] sm:$0xff]
    %v555 = vld [vmem:[#allocation2 + $0xd08] sm:$0xff]
    %v556 = vld [vmem:[#allocation2 + $0xd10] sm:$0xff]
    %v557 = vld [vmem:[#allocation2 + $0xd18] sm:$0xff]
    %v558 = vld [vmem:[#allocation2 + $0xd20] sm:$0xff]
    %v559 = vld [vmem:[#allocation2 + $0xd28] sm:$0xff]
    %v560 = vld [vmem:[#allocation2 + $0xd30] sm:$0xff]
    %v561 = vld [vmem:[#allocation2 + $0xd38] sm:$0xff]
    %v562 = vld [vmem:[#allocation2 + $0xd40] sm:$0xff]
    %v563 = vld [vmem:[#allocation2 + $0xd48] sm:$0xff]
    %v564 = vld [vmem:[#allocation2 + $0xd50] sm:$0xff]
    %v565 = vld [vmem:[#allocation2 + $0xd58] sm:$0xff]
    %v566 = vld [vmem:[#allocation2 + $0xd60] sm:$0xff]
    %v567 = vld [vmem:[#allocation2 + $0xd68] sm:$0xff]
    %v568 = vld [vmem:[#allocation2 + $0xd70] sm:$0xff]
    %v569 = vld [vmem:[#allocation2 + $0xd78] sm:$0xff]
    %v570 = vld [vmem:[#allocation2 + $0xd80] sm:$0xff]
    %v571 = vld [vmem:[#allocation2 + $0xd88] sm:$0xff]
    %v572 = vld [vmem:[#allocation2 + $0xd90] sm:$0xff]
    %v573 = vld [vmem:[#allocation2 + $0xd98] sm:$0xff]
    %v574 = vld [vmem:[#allocation2 + $0xda0] sm:$0xff]
    %v575 = vld [vmem:[#allocation2 + $0xda8] sm:$0xff]
    %v576 = vld [vmem:[#allocation2 + $0xdb0] sm:$0xff]
    %v577 = vld [vmem:[#allocation2 + $0xdb8] sm:$0xff]
    %v578 = vld [vmem:[#allocation2 + $0xdc0] sm:$0xff]
    %v579 = vld [vmem:[#allocation2 + $0xdc8] sm:$0xff]
    %v580 = vld [vmem:[#allocation2 + $0xdd0] sm:$0xff]
    %v581 = vld [vmem:[#allocation2 + $0xdd8] sm:$0xff]
    %v582 = vld [vmem:[#allocation2 + $0xde0] sm:$0xff]
    %v583 = vld [vmem:[#allocation2 + $0xde8] sm:$0xff]
    %v584 = vld [vmem:[#allocation2 + $0xdf0] sm:$0xff]
    %v585 = vld [vmem:[#allocation2 + $0xdf8] sm:$0xff]
    %v586 = vld [vmem:[#allocation2 + $0xe00] sm:$0xff]
    %v587 = vld [vmem:[#allocation2 + $0xe08] sm:$0xff]
    %v588 = vld [vmem:[#allocation2 + $0xe10] sm:$0xff]
    %v589 = vld [vmem:[#allocation2 + $0xe18] sm:$0xff]
    %v590 = vld [vmem:[#allocation2 + $0xe20] sm:$0xff]
    %v591 = vld [vmem:[#allocation2 + $0xe28] sm:$0xff]
    %v592 = vld [vmem:[#allocation2 + $0xe30] sm:$0xff]
    %v593 = vld [vmem:[#allocation2 + $0xe38] sm:$0xff]
    %v594 = vld [vmem:[#allocation2 + $0xe40] sm:$0xff]
    %v595 = vld [vmem:[#allocation2 + $0xe48] sm:$0xff]
    %v596 = vld [vmem:[#allocation2 + $0xe50] sm:$0xff]
    %v597 = vld [vmem:[#allocation2 + $0xe58] sm:$0xff]
    %v598 = vld [vmem:[#allocation2 + $0xe60] sm:$0xff]
    %v599 = vld [vmem:[#allocation2 + $0xe68] sm:$0xff]
    %v600 = vld [vmem:[#allocation2 + $0xe70] sm:$0xff]
    %v601 = vld [vmem:[#allocation2 + $0xe78] sm:$0xff]
    %v602 = vld [vmem:[#allocation2 + $0xe80] sm:$0xff]
    %v603 = vld [vmem:[#allocation2 + $0xe88] sm:$0xff]
    %v604 = vld [vmem:[#allocation2 + $0xe90] sm:$0xff]
    %v605 = vld [vmem:[#allocation2 + $0xe98] sm:$0xff]
    %v606 = vld [vmem:[#allocation2 + $0xea0] sm:$0xff]
    %v607 = vld [vmem:[#allocation2 + $0xea8] sm:$0xff]
    %v608 = vld [vmem:[#allocation2 + $0xeb0] sm:$0xff]
    %v609 = vld [vmem:[#allocation2 + $0xeb8] sm:$0xff]
    %v610 = vld [vmem:[#allocation2 + $0xec0] sm:$0xff]
    %v611 = vld [vmem:[#allocation2 + $0xec8] sm:$0xff]
    %v612 = vld [vmem:[#allocation2 + $0xed0] sm:$0xff]
    %v613 = vld [vmem:[#allocation2 + $0xed8] sm:$0xff]
    %v614 = vld [vmem:[#allocation2 + $0xee0] sm:$0xff]
    %v615 = vld [vmem:[#allocation2 + $0xee8] sm:$0xff]
    %v616 = vld [vmem:[#allocation2 + $0xef0] sm:$0xff]
    %v617 = vld [vmem:[#allocation2 + $0xef8] sm:$0xff]
    %v618 = vld [vmem:[#allocation2 + $0xf00] sm:$0xff]
    %v619 = vld [vmem:[#allocation2 + $0xf08] sm:$0xff]
    %v620 = vld [vmem:[#allocation2 + $0xf10] sm:$0xff]
    %v621 = vld [vmem:[#allocation2 + $0xf18] sm:$0xff]
    %v622 = vld [vmem:[#allocation2 + $0xf20] sm:$0xff]
    %v623 = vld [vmem:[#allocation2 + $0xf28] sm:$0xff]
    %v624 = vld [vmem:[#allocation2 + $0xf30] sm:$0xff]
    %v625 = vld [vmem:[#allocation2 + $0xf38] sm:$0xff]
    %v626 = vld [vmem:[#allocation2 + $0xf40] sm:$0xff]
    %v627 = vld [vmem:[#allocation2 + $0xf48] sm:$0xff]
    %v628 = vld [vmem:[#allocation2 + $0xf50] sm:$0xff]
    %v629 = vld [vmem:[#allocation2 + $0xf58] sm:$0xff]
    %v630 = vld [vmem:[#allocation2 + $0xf60] sm:$0xff]
    %v631 = vld [vmem:[#allocation2 + $0xf68] sm:$0xff]
    %v632 = vld [vmem:[#allocation2 + $0xf70] sm:$0xff]
    %v633 = vld [vmem:[#allocation2 + $0xf78] sm:$0xff]
    %v634 = vld [vmem:[#allocation2 + $0xf80] sm:$0xff]
    %v635 = vld [vmem:[#allocation2 + $0xf88] sm:$0xff]
    %v636 = vld [vmem:[#allocation2 + $0xf90] sm:$0xff]
    %v637 = vld [vmem:[#allocation2 + $0xf98] sm:$0xff]
    %v638 = vld [vmem:[#allocation2 + $0xfa0] sm:$0xff]
    %v639 = vld [vmem:[#allocation2 + $0xfa8] sm:$0xff]
    %v640 = vld [vmem:[#allocation2 + $0xfb0] sm:$0xff]
    %v641 = vld [vmem:[#allocation2 + $0xfb8] sm:$0xff]
    %v642 = vld [vmem:[#allocation2 + $0xfc0] sm:$0xff]
    %v643 = vld [vmem:[#allocation2 + $0xfc8] sm:$0xff]
    %v644 = vld [vmem:[#allocation2 + $0xfd0] sm:$0xff]
    %v645 = vld [vmem:[#allocation2 + $0xfd8] sm:$0xff]
    %v646 = vld [vmem:[#allocation2 + $0xfe0] sm:$0xff]
    %v647 = vld [vmem:[#allocation2 + $0xfe8] sm:$0xff]
    %v648 = vld [vmem:[#allocation2 + $0xff0] sm:$0xff]
    %v649 = vld [vmem:[#allocation2 + $0xff8] sm:$0xff]
    %v650 = vld [vmem:[#allocation2 + $0x1000] sm:$0xff]
    %v651 = vld [vmem:[#allocation2 + $0x1008] sm:$0xff]
    %v652 = vld [vmem:[#allocation2 + $0x1010] sm:$0xff]
    %v653 = vld [vmem:[#allocation2 + $0x1018] sm:$0xff]
    %v654 = vld [vmem:[#allocation2 + $0x1020] sm:$0xff]
    %v655 = vld [vmem:[#allocation2 + $0x1028] sm:$0xff]
    %v656 = vld [vmem:[#allocation2 + $0x1030] sm:$0xff]
    %v657 = vld [vmem:[#allocation2 + $0x1038] sm:$0xff]
    %v658 = vld [vmem:[#allocation2 + $0x1040] sm:$0xff]
    %v659 = vld [vmem:[#allocation2 + $0x1048] sm:$0xff]
    %v660 = vld [vmem:[#allocation2 + $0x1050] sm:$0xff]
    %v661 = vld [vmem:[#allocation2 + $0x1058] sm:$0xff]
    %v662 = vld [vmem:[#allocation2 + $0x1060] sm:$0xff]
    %v663 = vld [vmem:[#allocation2 + $0x1068] sm:$0xff]
    %v664 = vld [vmem:[#allocation2 + $0x1070] sm:$0xff]
    %v665 = vld [vmem:[#allocation2 + $0x1078] sm:$0xff]
    %v666 = vld [vmem:[#allocation2 + $0x1080] sm:$0xff]
    %v667 = vld [vmem:[#allocation2 + $0x1088] sm:$0xff]
    %v668 = vld [vmem:[#allocation2 + $0x1090] sm:$0xff]
    %v669 = vld [vmem:[#allocation2 + $0x1098] sm:$0xff]
    %v670 = vld [vmem:[#allocation2 + $0x10a0] sm:$0xff]
    %v671 = vld [vmem:[#allocation2 + $0x10a8] sm:$0xff]
    %v672 = vld [vmem:[#allocation2 + $0x10b0] sm:$0xff]
    %v673 = vld [vmem:[#allocation2 + $0x10b8] sm:$0xff]
    %v674 = vld [vmem:[#allocation2 + $0x10c0] sm:$0xff]
    %v675 = vld [vmem:[#allocation2 + $0x10c8] sm:$0xff]
    %v676 = vld [vmem:[#allocation2 + $0x10d0] sm:$0xff]
    %v677 = vld [vmem:[#allocation2 + $0x10d8] sm:$0xff]
    %v678 = vld [vmem:[#allocation2 + $0x10e0] sm:$0xff]
    %v679 = vld [vmem:[#allocation2 + $0x10e8] sm:$0xff]
    %v680 = vld [vmem:[#allocation2 + $0x10f0] sm:$0xff]
    %v681 = vld [vmem:[#allocation2 + $0x10f8] sm:$0xff]
    %v682 = vld [vmem:[#allocation2 + $0x1100] sm:$0xff]
    %v683 = vld [vmem:[#allocation2 + $0x1108] sm:$0xff]
    %v684 = vld [vmem:[#allocation2 + $0x1110] sm:$0xff]
    %v685 = vld [vmem:[#allocation2 + $0x1118] sm:$0xff]
    %v686 = vld [vmem:[#allocation2 + $0x1120] sm:$0xff]
    %v687 = vld [vmem:[#allocation2 + $0x1128] sm:$0xff]
    %v688 = vld [vmem:[#allocation2 + $0x1130] sm:$0xff]
    %v689 = vld [vmem:[#allocation2 + $0x1138] sm:$0xff]
    %v690 = vld [vmem:[#allocation2 + $0x1140] sm:$0xff]
    %v691 = vld [vmem:[#allocation2 + $0x1148] sm:$0xff]
    %v692 = vld [vmem:[#allocation2 + $0x1150] sm:$0xff]
    %v693 = vld [vmem:[#allocation2 + $0x1158] sm:$0xff]
    %v694 = vld [vmem:[#allocation2 + $0x1160] sm:$0xff]
    %v695 = vld [vmem:[#allocation2 + $0x1168] sm:$0xff]
    %v696 = vld [vmem:[#allocation2 + $0x1170] sm:$0xff]
    %v697 = vld [vmem:[#allocation2 + $0x1178] sm:$0xff]
    %v698 = vld [vmem:[#allocation2 + $0x1180] sm:$0xff]
    %v699 = vld [vmem:[#allocation2 + $0x1188] sm:$0xff]
    %v700 = vld [vmem:[#allocation2 + $0x1190] sm:$0xff]
    %v701 = vld [vmem:[#allocation2 + $0x1198] sm:$0xff]
    %v702 = vld [vmem:[#allocation2 + $0x11a0] sm:$0xff]
    %v703 = vld [vmem:[#allocation2 + $0x11a8] sm:$0xff]
    %v704 = vld [vmem:[#allocation2 + $0x11b0] sm:$0xff]
    %v705 = vld [vmem:[#allocation2 + $0x11b8] sm:$0xff]
    %v706 = vld [vmem:[#allocation2 + $0x11c0] sm:$0xff]
    %v707 = vld [vmem:[#allocation2 + $0x11c8] sm:$0xff]
    %v708 = vld [vmem:[#allocation2 + $0x11d0] sm:$0xff]
    %v709 = vld [vmem:[#allocation2 + $0x11d8] sm:$0xff]
    %v710 = vld [vmem:[#allocation2 + $0x11e0] sm:$0xff]
    %v711 = vld [vmem:[#allocation2 + $0x11e8] sm:$0xff]
    %v712 = vld [vmem:[#allocation2 + $0x11f0] sm:$0xff]
    %v713 = vld [vmem:[#allocation2 + $0x11f8] sm:$0xff]
    %v714 = vld [vmem:[#allocation2 + $0x1200] sm:$0xff]
    %v715 = vld [vmem:[#allocation2 + $0x1208] sm:$0xff]
    %v716 = vld [vmem:[#allocation2 + $0x1210] sm:$0xff]
    %v717 = vld [vmem:[#allocation2 + $0x1218] sm:$0xff]
    %v718 = vld [vmem:[#allocation2 + $0x1220] sm:$0xff]
    %v719 = vld [vmem:[#allocation2 + $0x1228] sm:$0xff]
    %v720 = vld [vmem:[#allocation2 + $0x1230] sm:$0xff]
    %v721 = vld [vmem:[#allocation2 + $0x1238] sm:$0xff]
    %v722 = vld [vmem:[#allocation2 + $0x1240] sm:$0xff]
    %v723 = vld [vmem:[#allocation2 + $0x1248] sm:$0xff]
    %v724 = vld [vmem:[#allocation2 + $0x1250] sm:$0xff]
    %v725 = vld [vmem:[#allocation2 + $0x1258] sm:$0xff]
    %v726 = vld [vmem:[#allocation2 + $0x1260] sm:$0xff]
    %v727 = vld [vmem:[#allocation2 + $0x1268] sm:$0xff]
    %v728 = vld [vmem:[#allocation2 + $0x1270] sm:$0xff]
    %v729 = vld [vmem:[#allocation2 + $0x1278] sm:$0xff]
    %v730 = vld [vmem:[#allocation2 + $0x1280] sm:$0xff]
    %v731 = vld [vmem:[#allocation2 + $0x1288] sm:$0xff]
    %v732 = vld [vmem:[#allocation2 + $0x1290] sm:$0xff]
    %v733 = vld [vmem:[#allocation2 + $0x1298] sm:$0xff]
    %v734 = vld [vmem:[#allocation2 + $0x12a0] sm:$0xff]
    %v735 = vld [vmem:[#allocation2 + $0x12a8] sm:$0xff]
    %v736 = vld [vmem:[#allocation2 + $0x12b0] sm:$0xff]
    %v737 = vld [vmem:[#allocation2 + $0x12b8] sm:$0xff]
    %v738 = vld [vmem:[#allocation2 + $0x12c0] sm:$0xff]
    %v739 = vld [vmem:[#allocation2 + $0x12c8] sm:$0xff]
    %v740 = vld [vmem:[#allocation2 + $0x12d0] sm:$0xff]
    %v741 = vld [vmem:[#allocation2 + $0x12d8] sm:$0xff]
    %v742 = vld [vmem:[#allocation2 + $0x12e0] sm:$0xff]
    %v743 = vld [vmem:[#allocation2 + $0x12e8] sm:$0xff]
    %v744 = vld [vmem:[#allocation2 + $0x12f0] sm:$0xff]
    %v745 = vld [vmem:[#allocation2 + $0x12f8] sm:$0xff]
    %v746 = vld [vmem:[#allocation2 + $0x1300] sm:$0xff]
    %v747 = vld [vmem:[#allocation2 + $0x1308] sm:$0xff]
    %v748 = vld [vmem:[#allocation2 + $0x1310] sm:$0xff]
    %v749 = vld [vmem:[#allocation2 + $0x1318] sm:$0xff]
    %v750 = vld [vmem:[#allocation2 + $0x1320] sm:$0xff]
    %v751 = vld [vmem:[#allocation2 + $0x1328] sm:$0xff]
    %v752 = vld [vmem:[#allocation2 + $0x1330] sm:$0xff]
    %v753 = vld [vmem:[#allocation2 + $0x1338] sm:$0xff]
    %v754 = vld [vmem:[#allocation2 + $0x1340] sm:$0xff]
    %v755 = vld [vmem:[#allocation2 + $0x1348] sm:$0xff]
    %v756 = vld [vmem:[#allocation2 + $0x1350] sm:$0xff]
    %v757 = vld [vmem:[#allocation2 + $0x1358] sm:$0xff]
    %v758 = vld [vmem:[#allocation2 + $0x1360] sm:$0xff]
    %v759 = vld [vmem:[#allocation2 + $0x1368] sm:$0xff]
    %v760 = vld [vmem:[#allocation2 + $0x1370] sm:$0xff]
    %v761 = vld [vmem:[#allocation2 + $0x1378] sm:$0xff]
    %v762 = vld [vmem:[#allocation2 + $0x1380] sm:$0xff]
    %v763 = vld [vmem:[#allocation2 + $0x1388] sm:$0xff]
    %v764 = vld [vmem:[#allocation2 + $0x1390] sm:$0xff]
    %v765 = vld [vmem:[#allocation2 + $0x1398] sm:$0xff]
    %v766 = vld [vmem:[#allocation2 + $0x13a0] sm:$0xff]
    %v767 = vld [vmem:[#allocation2 + $0x13a8] sm:$0xff]
    %v768 = vld [vmem:[#allocation2 + $0x13b0] sm:$0xff]
    %v769 = vld [vmem:[#allocation2 + $0x13b8] sm:$0xff]
    %v770 = vld [vmem:[#allocation2 + $0x13c0] sm:$0xff]
    %v771 = vld [vmem:[#allocation2 + $0x13c8] sm:$0xff]
    %v772 = vld [vmem:[#allocation2 + $0x13d0] sm:$0xff]
    %v773 = vld [vmem:[#allocation2 + $0x13d8] sm:$0xff]
    %v774 = vld [vmem:[#allocation2 + $0x13e0] sm:$0xff]
    %v775 = vld [vmem:[#allocation2 + $0x13e8] sm:$0xff]
    %v776 = vld [vmem:[#allocation2 + $0x13f0] sm:$0xff]
    %v777 = vld [vmem:[#allocation2 + $0x13f8] sm:$0xff]
    %v778 = vld [vmem:[#allocation2 + $0x1400] sm:$0xff]
    %v779 = vld [vmem:[#allocation2 + $0x1408] sm:$0xff]
    %v780 = vld [vmem:[#allocation2 + $0x1410] sm:$0xff]
    %v781 = vld [vmem:[#allocation2 + $0x1418] sm:$0xff]
    %v782 = vld [vmem:[#allocation2 + $0x1420] sm:$0xff]
    %v783 = vld [vmem:[#allocation2 + $0x1428] sm:$0xff]
    %v784 = vld [vmem:[#allocation2 + $0x1430] sm:$0xff]
    %v785 = vld [vmem:[#allocation2 + $0x1438] sm:$0xff]
    %v786 = vld [vmem:[#allocation2 + $0x1440] sm:$0xff]
    %v787 = vld [vmem:[#allocation2 + $0x1448] sm:$0xff]
    %v788 = vld [vmem:[#allocation2 + $0x1450] sm:$0xff]
    %v789 = vld [vmem:[#allocation2 + $0x1458] sm:$0xff]
    %v790 = vld [vmem:[#allocation2 + $0x1460] sm:$0xff]
    %v791 = vld [vmem:[#allocation2 + $0x1468] sm:$0xff]
    %v792 = vld [vmem:[#allocation2 + $0x1470] sm:$0xff]
    %v793 = vld [vmem:[#allocation2 + $0x1478] sm:$0xff]
    %v794 = vld [vmem:[#allocation2 + $0x1480] sm:$0xff]
    %v795 = vld [vmem:[#allocation2 + $0x1488] sm:$0xff]
    %v796 = vld [vmem:[#allocation2 + $0x1490] sm:$0xff]
    %v797 = vld [vmem:[#allocation2 + $0x1498] sm:$0xff]
    %v798 = vld [vmem:[#allocation2 + $0x14a0] sm:$0xff]
    %v799 = vld [vmem:[#allocation2 + $0x14a8] sm:$0xff]
    %v800 = vld [vmem:[#allocation2 + $0x14b0] sm:$0xff]
    %v801 = vld [vmem:[#allocation2 + $0x14b8] sm:$0xff]
    %v802 = vld [vmem:[#allocation2 + $0x14c0] sm:$0xff]
    %v803 = vld [vmem:[#allocation2 + $0x14c8] sm:$0xff]
    %v804 = vld [vmem:[#allocation2 + $0x14d0] sm:$0xff]
    %v805 = vld [vmem:[#allocation2 + $0x14d8] sm:$0xff]
    %v806 = vld [vmem:[#allocation2 + $0x14e0] sm:$0xff]
    %v807 = vld [vmem:[#allocation2 + $0x14e8] sm:$0xff]
    %v808 = vld [vmem:[#allocation2 + $0x14f0] sm:$0xff]
    %v809 = vld [vmem:[#allocation2 + $0x14f8] sm:$0xff]
    %v810 = vld [vmem:[#allocation2 + $0x1500] sm:$0xff]
    %v811 = vld [vmem:[#allocation2 + $0x1508] sm:$0xff]
    %v812 = vld [vmem:[#allocation2 + $0x1510] sm:$0xff]
    %v813 = vld [vmem:[#allocation2 + $0x1518] sm:$0xff]
    %v814 = vld [vmem:[#allocation2 + $0x1520] sm:$0xff]
    %v815 = vld [vmem:[#allocation2 + $0x1528] sm:$0xff]
    %v816 = vld [vmem:[#allocation2 + $0x1530] sm:$0xff]
    %v817 = vld [vmem:[#allocation2 + $0x1538] sm:$0xff]
    %v818 = vld [vmem:[#allocation2 + $0x1540] sm:$0xff]
    %v819 = vld [vmem:[#allocation2 + $0x1548] sm:$0xff]
    %v820 = vld [vmem:[#allocation2 + $0x1550] sm:$0xff]
    %v821 = vld [vmem:[#allocation2 + $0x1558] sm:$0xff]
    %v822 = vld [vmem:[#allocation2 + $0x1560] sm:$0xff]
    %v823 = vld [vmem:[#allocation2 + $0x1568] sm:$0xff]
    %v824 = vld [vmem:[#allocation2 + $0x1570] sm:$0xff]
    %v825 = vld [vmem:[#allocation2 + $0x1578] sm:$0xff]
    %v826 = vld [vmem:[#allocation2 + $0x1580] sm:$0xff]
    %v827 = vld [vmem:[#allocation2 + $0x1588] sm:$0xff]
    %v828 = vld [vmem:[#allocation2 + $0x1590] sm:$0xff]
    %v829 = vld [vmem:[#allocation2 + $0x1598] sm:$0xff]
    %v830 = vld [vmem:[#allocation2 + $0x15a0] sm:$0xff]
    %v831 = vld [vmem:[#allocation2 + $0x15a8] sm:$0xff]
    %v832 = vld [vmem:[#allocation2 + $0x15b0] sm:$0xff]
    %v833 = vld [vmem:[#allocation2 + $0x15b8] sm:$0xff]
    %v834 = vld [vmem:[#allocation2 + $0x15c0] sm:$0xff]
    %v835 = vld [vmem:[#allocation2 + $0x15c8] sm:$0xff]
    %v836 = vld [vmem:[#allocation2 + $0x15d0] sm:$0xff]
    %v837 = vld [vmem:[#allocation2 + $0x15d8] sm:$0xff]
    %v838 = vld [vmem:[#allocation2 + $0x15e0] sm:$0xff]
    %v839 = vld [vmem:[#allocation2 + $0x15e8] sm:$0xff]
    %v840 = vld [vmem:[#allocation2 + $0x15f0] sm:$0xff]
    %v841 = vld [vmem:[#allocation2 + $0x15f8] sm:$0xff]
    %v842 = vld [vmem:[#allocation2 + $0x1600] sm:$0xff]
    %v843 = vld [vmem:[#allocation2 + $0x1608] sm:$0xff]
    %v844 = vld [vmem:[#allocation2 + $0x1610] sm:$0xff]
    %v845 = vld [vmem:[#allocation2 + $0x1618] sm:$0xff]
    %v846 = vld [vmem:[#allocation2 + $0x1620] sm:$0xff]
    %v847 = vld [vmem:[#allocation2 + $0x1628] sm:$0xff]
    %v848 = vld [vmem:[#allocation2 + $0x1630] sm:$0xff]
    %v849 = vld [vmem:[#allocation2 + $0x1638] sm:$0xff]
    %v850 = vld [vmem:[#allocation2 + $0x1640] sm:$0xff]
    %v851 = vld [vmem:[#allocation2 + $0x1648] sm:$0xff]
    %v852 = vld [vmem:[#allocation2 + $0x1650] sm:$0xff]
    %v853 = vld [vmem:[#allocation2 + $0x1658] sm:$0xff]
    %v854 = vld [vmem:[#allocation2 + $0x1660] sm:$0xff]
    %v855 = vld [vmem:[#allocation2 + $0x1668] sm:$0xff]
    %v856 = vld [vmem:[#allocation2 + $0x1670] sm:$0xff]
    %v857 = vld [vmem:[#allocation2 + $0x1678] sm:$0xff]
    %v858 = vld [vmem:[#allocation2 + $0x1680] sm:$0xff]
    %v859 = vld [vmem:[#allocation2 + $0x1688] sm:$0xff]
    %v860 = vld [vmem:[#allocation2 + $0x1690] sm:$0xff]
    %v861 = vld [vmem:[#allocation2 + $0x1698] sm:$0xff]
    %v862 = vld [vmem:[#allocation2 + $0x16a0] sm:$0xff]
    %v863 = vld [vmem:[#allocation2 + $0x16a8] sm:$0xff]
    %v864 = vld [vmem:[#allocation2 + $0x16b0] sm:$0xff]
    %v865 = vld [vmem:[#allocation2 + $0x16b8] sm:$0xff]
    %v866 = vld [vmem:[#allocation2 + $0x16c0] sm:$0xff]
    %v867 = vld [vmem:[#allocation2 + $0x16c8] sm:$0xff]
    %v868 = vld [vmem:[#allocation2 + $0x16d0] sm:$0xff]
    %v869 = vld [vmem:[#allocation2 + $0x16d8] sm:$0xff]
    %v870 = vld [vmem:[#allocation2 + $0x16e0] sm:$0xff]
    %v871 = vld [vmem:[#allocation2 + $0x16e8] sm:$0xff]
    %v872 = vld [vmem:[#allocation2 + $0x16f0] sm:$0xff]
    %v873 = vld [vmem:[#allocation2 + $0x16f8] sm:$0xff]
    %v874 = vld [vmem:[#allocation2 + $0x1700] sm:$0xff]
    %v875 = vld [vmem:[#allocation2 + $0x1708] sm:$0xff]
    %v876 = vld [vmem:[#allocation2 + $0x1710] sm:$0xff]
    %v877 = vld [vmem:[#allocation2 + $0x1718] sm:$0xff]
    %v878 = vld [vmem:[#allocation2 + $0x1720] sm:$0xff]
    %v879 = vld [vmem:[#allocation2 + $0x1728] sm:$0xff]
    %v880 = vld [vmem:[#allocation2 + $0x1730] sm:$0xff]
    %v881 = vld [vmem:[#allocation2 + $0x1738] sm:$0xff]
    %v882 = vld [vmem:[#allocation2 + $0x1740] sm:$0xff]
    %v883 = vld [vmem:[#allocation2 + $0x1748] sm:$0xff]
    %v884 = vld [vmem:[#allocation2 + $0x1750] sm:$0xff]
    %v885 = vld [vmem:[#allocation2 + $0x1758] sm:$0xff]
    %v886 = vld [vmem:[#allocation2 + $0x1760] sm:$0xff]
    %v887 = vld [vmem:[#allocation2 + $0x1768] sm:$0xff]
    %v888 = vld [vmem:[#allocation2 + $0x1770] sm:$0xff]
    %v889 = vld [vmem:[#allocation2 + $0x1778] sm:$0xff]
    %v890 = vld [vmem:[#allocation2 + $0x1780] sm:$0xff]
    %v891 = vld [vmem:[#allocation2 + $0x1788] sm:$0xff]
    %v892 = vld [vmem:[#allocation2 + $0x1790] sm:$0xff]
    %v893 = vld [vmem:[#allocation2 + $0x1798] sm:$0xff]
    %v894 = vld [vmem:[#allocation2 + $0x17a0] sm:$0xff]
    %v895 = vld [vmem:[#allocation2 + $0x17a8] sm:$0xff]
    %v896 = vld [vmem:[#allocation2 + $0x17b0] sm:$0xff]
    %v897 = vld [vmem:[#allocation2 + $0x17b8] sm:$0xff]
    %v898 = vld [vmem:[#allocation2 + $0x17c0] sm:$0xff]
    %v899 = vld [vmem:[#allocation2 + $0x17c8] sm:$0xff]
    %v900 = vld [vmem:[#allocation2 + $0x17d0] sm:$0xff]
    %v901 = vld [vmem:[#allocation2 + $0x17d8] sm:$0xff]
    %v902 = vld [vmem:[#allocation2 + $0x17e0] sm:$0xff]
    %v903 = vld [vmem:[#allocation2 + $0x17e8] sm:$0xff]
    %v904 = vld [vmem:[#allocation2 + $0x17f0] sm:$0xff]
    %v905 = vld [vmem:[#allocation2 + $0x17f8] sm:$0xff]
    %v906 = vld [vmem:[#allocation2 + $0x1800] sm:$0xff]
    %v907 = vld [vmem:[#allocation2 + $0x1808] sm:$0xff]
    %v908 = vld [vmem:[#allocation2 + $0x1810] sm:$0xff]
    %v909 = vld [vmem:[#allocation2 + $0x1818] sm:$0xff]
    %v910 = vld [vmem:[#allocation2 + $0x1820] sm:$0xff]
    %v911 = vld [vmem:[#allocation2 + $0x1828] sm:$0xff]
    %v912 = vld [vmem:[#allocation2 + $0x1830] sm:$0xff]
    %v913 = vld [vmem:[#allocation2 + $0x1838] sm:$0xff]
    %v914 = vld [vmem:[#allocation2 + $0x1840] sm:$0xff]
    %v915 = vld [vmem:[#allocation2 + $0x1848] sm:$0xff]
    %v916 = vld [vmem:[#allocation2 + $0x1850] sm:$0xff]
    %v917 = vld [vmem:[#allocation2 + $0x1858] sm:$0xff]
    %v918 = vld [vmem:[#allocation2 + $0x1860] sm:$0xff]
    %v919 = vld [vmem:[#allocation2 + $0x1868] sm:$0xff]
    %v920 = vld [vmem:[#allocation2 + $0x1870] sm:$0xff]
    %v921 = vld [vmem:[#allocation2 + $0x1878] sm:$0xff]
    %v922 = vld [vmem:[#allocation4] sm:$0xff]
    %v924 = vperm.slane %v922, 0
    %v925 = vperm.slane %v922, 1
    %v926 = vperm.slane %v922, 2
    %v927 = vperm.slane %v922, 3
    %v928 = vperm.slane %v922, 4
    %v929 = vperm.slane %v922, 5
    %v930 = vperm.slane %v922, 6
    %v931 = vperm.slane %v922, 7
    %vm940 = vcmask 130048
    %v942 = vsel %vm940, %v137, 0
    %944 = vmatpush.msra.mxu0 %v258
    %945 = vmatpush.msra.mxu0 %v250
    %946 = vmatpush.msra.mxu0 %v242
    %947 = vmatpush.msra.mxu0 %v234
    %948 = vmatpush.msra.mxu0 %v226
    %949 = vmatpush.msra.mxu0 %v218
    %950 = vmatpush.msra.mxu0 %v210
    %951 = vmatpush.msra.mxu0 %v202
    %952 = vmatpush.msra.mxu0 %v194
    %953 = vmatpush.msra.mxu0 %v186
    %954 = vmatpush.msra.mxu0 %v178
    %955 = vmatpush.msra.mxu0 %v170
    %956 = vmatpush.msra.mxu0 %v162
    %957 = vmatpush.msra.mxu0 %v154
    %958 = vmatpush.msra.mxu0 %v146
    %959 = vmatpush.msra.mxu0 %v138
    %960 = vmatmul.f32.gmra.mxu0 %v131
    %v961 = vpop.f32.mrf.mxu0
    %v962 = vadd.f32 %v924, %v961
    %963 = vdwg.mxu0
    %964 = vmatpush.msra.mxu0 %v386
    %965 = vmatpush.msra.mxu0 %v378
    %966 = vmatpush.msra.mxu0 %v370
    %967 = vmatpush.msra.mxu0 %v362
    %968 = vmatpush.msra.mxu0 %v354
    %969 = vmatpush.msra.mxu0 %v346
    %970 = vmatpush.msra.mxu0 %v338
    %971 = vmatpush.msra.mxu0 %v330
    %972 = vmatpush.msra.mxu0 %v322
    %973 = vmatpush.msra.mxu0 %v314
    %974 = vmatpush.msra.mxu0 %v306
    %975 = vmatpush.msra.mxu0 %v298
    %976 = vmatpush.msra.mxu0 %v290
    %977 = vmatpush.msra.mxu0 %v282
    %978 = vmatpush.msra.mxu0 %v274
    %979 = vmatpush.msra.mxu0 %v266
    %980 = vmatmul.f32.gmra.mxu0 %v132
    %v981 = vpop.f32.mrf.mxu0
    %v982 = vadd.f32 %v962, %v981
    %983 = vdwg.mxu0
    %984 = vmatpush.msra.mxu0 %v514
    %985 = vmatpush.msra.mxu0 %v506
    %986 = vmatpush.msra.mxu0 %v498
    %987 = vmatpush.msra.mxu0 %v490
    %988 = vmatpush.msra.mxu0 %v482
    %989 = vmatpush.msra.mxu0 %v474
    %990 = vmatpush.msra.mxu0 %v466
    %991 = vmatpush.msra.mxu0 %v458
    %992 = vmatpush.msra.mxu0 %v450
    %993 = vmatpush.msra.mxu0 %v442
    %994 = vmatpush.msra.mxu0 %v434
    %995 = vmatpush.msra.mxu0 %v426
    %996 = vmatpush.msra.mxu0 %v418
    %997 = vmatpush.msra.mxu0 %v410
    %998 = vmatpush.msra.mxu0 %v402
    %999 = vmatpush.msra.mxu0 %v394
    %1000 = vmatmul.f32.gmra.mxu0 %v133
    %v1001 = vpop.f32.mrf.mxu0
    %v1002 = vadd.f32 %v982, %v1001
    %1003 = vdwg.mxu0
    %1004 = vmatpush.msra.mxu0 %v642
    %1005 = vmatpush.msra.mxu0 %v634
    %1006 = vmatpush.msra.mxu0 %v626
    %1007 = vmatpush.msra.mxu0 %v618
    %1008 = vmatpush.msra.mxu0 %v610
    %1009 = vmatpush.msra.mxu0 %v602
    %1010 = vmatpush.msra.mxu0 %v594
    %1011 = vmatpush.msra.mxu0 %v586
    %1012 = vmatpush.msra.mxu0 %v578
    %1013 = vmatpush.msra.mxu0 %v570
    %1014 = vmatpush.msra.mxu0 %v562
    %1015 = vmatpush.msra.mxu0 %v554
    %1016 = vmatpush.msra.mxu0 %v546
    %1017 = vmatpush.msra.mxu0 %v538
    %1018 = vmatpush.msra.mxu0 %v530
    %1019 = vmatpush.msra.mxu0 %v522
    %1020 = vmatmul.f32.gmra.mxu0 %v134
    %v1021 = vpop.f32.mrf.mxu0
    %v1022 = vadd.f32 %v1002, %v1021
    %1023 = vdwg.mxu0
    %1024 = vmatpush.msra.mxu0 %v770
    %1025 = vmatpush.msra.mxu0 %v762
    %1026 = vmatpush.msra.mxu0 %v754
    %1027 = vmatpush.msra.mxu0 %v746
    %1028 = vmatpush.msra.mxu0 %v738
    %1029 = vmatpush.msra.mxu0 %v730
    %1030 = vmatpush.msra.mxu0 %v722
    %1031 = vmatpush.msra.mxu0 %v714
    %1032 = vmatpush.msra.mxu0 %v706
    %1033 = vmatpush.msra.mxu0 %v698
    %1034 = vmatpush.msra.mxu0 %v690
    %1035 = vmatpush.msra.mxu0 %v682
    %1036 = vmatpush.msra.mxu0 %v674
    %1037 = vmatpush.msra.mxu0 %v666
    %1038 = vmatpush.msra.mxu0 %v658
    %1039 = vmatpush.msra.mxu0 %v650
    %1040 = vmatmul.f32.gmra.mxu0 %v135
    %v1041 = vpop.f32.mrf.mxu0
    %v1042 = vadd.f32 %v1022, %v1041
    %1043 = vdwg.mxu0
    %1044 = vmatpush.msra.mxu0 %v898
    %1045 = vmatpush.msra.mxu0 %v890
    %1046 = vmatpush.msra.mxu0 %v882
    %1047 = vmatpush.msra.mxu0 %v874
    %1048 = vmatpush.msra.mxu0 %v866
    %1049 = vmatpush.msra.mxu0 %v858
    %1050 = vmatpush.msra.mxu0 %v850
    %1051 = vmatpush.msra.mxu0 %v842
    %1052 = vmatpush.msra.mxu0 %v834
    %1053 = vmatpush.msra.mxu0 %v826
    %1054 = vmatpush.msra.mxu0 %v818
    %1055 = vmatpush.msra.mxu0 %v810
    %1056 = vmatpush.msra.mxu0 %v802
    %1057 = vmatpush.msra.mxu0 %v794
    %1058 = vmatpush.msra.mxu0 %v786
    %1059 = vmatpush.msra.mxu0 %v778
    %1060 = vmatmul.f32.gmra.mxu0 %v136
    %v1061 = vpop.f32.mrf.mxu0
    %v1062 = vadd.f32 %v1042, %v1061
    %1063 = vdwg.mxu0
    %1064 = vmatpush.msra.mxu0 0.0
    %1065 = vmatpush.msra.mxu0 0.0
    %1066 = vmatpush.msra.mxu0 0.0
    %1067 = vmatpush.msra.mxu0 0.0
    %1068 = vmatpush.msra.mxu0 0.0
    %1069 = vmatpush.msra.mxu0 0.0
    %1070 = vmatpush.msra.mxu0 0.0
    %1071 = vmatpush.msra.mxu0 0.0
    %1072 = vmatpush.msra.mxu0 0.0
    %1073 = vmatpush.msra.mxu0 0.0
    %1074 = vmatpush.msra.mxu0 0.0
    %1075 = vmatpush.msra.mxu0 0.0
    %1076 = vmatpush.msra.mxu0 0.0
    %1077 = vmatpush.msra.mxu0 0.0
    %1078 = vmatpush.msra.mxu0 %v914
    %1079 = vmatpush.msra.mxu0 %v906
    %1080 = vmatmul.f32.gmra.mxu0 %v942
    %v1081 = vpop.f32.mrf.mxu0
    %v1082 = vadd.f32 %v1062, %v1081
    %1083 = vdwg.mxu0
    %1084 = vmatpush.msra.mxu0 %v259
    %1085 = vmatpush.msra.mxu0 %v251
    %1086 = vmatpush.msra.mxu0 %v243
    %1087 = vmatpush.msra.mxu0 %v235
    %1088 = vmatpush.msra.mxu0 %v227
    %1089 = vmatpush.msra.mxu0 %v219
    %1090 = vmatpush.msra.mxu0 %v211
    %1091 = vmatpush.msra.mxu0 %v203
    %1092 = vmatpush.msra.mxu0 %v195
    %1093 = vmatpush.msra.mxu0 %v187
    %1094 = vmatpush.msra.mxu0 %v179
    %1095 = vmatpush.msra.mxu0 %v171
    %1096 = vmatpush.msra.mxu0 %v163
    %1097 = vmatpush.msra.mxu0 %v155
    %1098 = vmatpush.msra.mxu0 %v147
    %1099 = vmatpush.msra.mxu0 %v139
    %1100 = vmatmul.f32.gmra.mxu0 %v131
    %v1101 = vpop.f32.mrf.mxu0
    %v1102 = vadd.f32 %v925, %v1101
    %1103 = vdwg.mxu0
    %1104 = vmatpush.msra.mxu0 %v387
    %1105 = vmatpush.msra.mxu0 %v379
    %1106 = vmatpush.msra.mxu0 %v371
    %1107 = vmatpush.msra.mxu0 %v363
    %1108 = vmatpush.msra.mxu0 %v355
    %1109 = vmatpush.msra.mxu0 %v347
    %1110 = vmatpush.msra.mxu0 %v339
    %1111 = vmatpush.msra.mxu0 %v331
    %1112 = vmatpush.msra.mxu0 %v323
    %1113 = vmatpush.msra.mxu0 %v315
    %1114 = vmatpush.msra.mxu0 %v307
    %1115 = vmatpush.msra.mxu0 %v299
    %1116 = vmatpush.msra.mxu0 %v291
    %1117 = vmatpush.msra.mxu0 %v283
    %1118 = vmatpush.msra.mxu0 %v275
    %1119 = vmatpush.msra.mxu0 %v267
    %1120 = vmatmul.f32.gmra.mxu0 %v132
    %v1121 = vpop.f32.mrf.mxu0
    %v1122 = vadd.f32 %v1102, %v1121
    %1123 = vdwg.mxu0
    %1124 = vmatpush.msra.mxu0 %v515
    %1125 = vmatpush.msra.mxu0 %v507
    %1126 = vmatpush.msra.mxu0 %v499
    %1127 = vmatpush.msra.mxu0 %v491
    %1128 = vmatpush.msra.mxu0 %v483
    %1129 = vmatpush.msra.mxu0 %v475
    %1130 = vmatpush.msra.mxu0 %v467
    %1131 = vmatpush.msra.mxu0 %v459
    %1132 = vmatpush.msra.mxu0 %v451
    %1133 = vmatpush.msra.mxu0 %v443
    %1134 = vmatpush.msra.mxu0 %v435
    %1135 = vmatpush.msra.mxu0 %v427
    %1136 = vmatpush.msra.mxu0 %v419
    %1137 = vmatpush.msra.mxu0 %v411
    %1138 = vmatpush.msra.mxu0 %v403
    %1139 = vmatpush.msra.mxu0 %v395
    %1140 = vmatmul.f32.gmra.mxu0 %v133
    %v1141 = vpop.f32.mrf.mxu0
    %v1142 = vadd.f32 %v1122, %v1141
    %1143 = vdwg.mxu0
    %1144 = vmatpush.msra.mxu0 %v643
    %1145 = vmatpush.msra.mxu0 %v635
    %1146 = vmatpush.msra.mxu0 %v627
    %1147 = vmatpush.msra.mxu0 %v619
    %1148 = vmatpush.msra.mxu0 %v611
    %1149 = vmatpush.msra.mxu0 %v603
    %1150 = vmatpush.msra.mxu0 %v595
    %1151 = vmatpush.msra.mxu0 %v587
    %1152 = vmatpush.msra.mxu0 %v579
    %1153 = vmatpush.msra.mxu0 %v571
    %1154 = vmatpush.msra.mxu0 %v563
    %1155 = vmatpush.msra.mxu0 %v555
    %1156 = vmatpush.msra.mxu0 %v547
    %1157 = vmatpush.msra.mxu0 %v539
    %1158 = vmatpush.msra.mxu0 %v531
    %1159 = vmatpush.msra.mxu0 %v523
    %1160 = vmatmul.f32.gmra.mxu0 %v134
    %v1161 = vpop.f32.mrf.mxu0
    %v1162 = vadd.f32 %v1142, %v1161
    %1163 = vdwg.mxu0
    %1164 = vmatpush.msra.mxu0 %v771
    %1165 = vmatpush.msra.mxu0 %v763
    %1166 = vmatpush.msra.mxu0 %v755
    %1167 = vmatpush.msra.mxu0 %v747
    %1168 = vmatpush.msra.mxu0 %v739
    %1169 = vmatpush.msra.mxu0 %v731
    %1170 = vmatpush.msra.mxu0 %v723
    %1171 = vmatpush.msra.mxu0 %v715
    %1172 = vmatpush.msra.mxu0 %v707
    %1173 = vmatpush.msra.mxu0 %v699
    %1174 = vmatpush.msra.mxu0 %v691
    %1175 = vmatpush.msra.mxu0 %v683
    %1176 = vmatpush.msra.mxu0 %v675
    %1177 = vmatpush.msra.mxu0 %v667
    %1178 = vmatpush.msra.mxu0 %v659
    %1179 = vmatpush.msra.mxu0 %v651
    %1180 = vmatmul.f32.gmra.mxu0 %v135
    %v1181 = vpop.f32.mrf.mxu0
    %v1182 = vadd.f32 %v1162, %v1181
    %1183 = vdwg.mxu0
    %1184 = vmatpush.msra.mxu0 %v899
    %1185 = vmatpush.msra.mxu0 %v891
    %1186 = vmatpush.msra.mxu0 %v883
    %1187 = vmatpush.msra.mxu0 %v875
    %1188 = vmatpush.msra.mxu0 %v867
    %1189 = vmatpush.msra.mxu0 %v859
    %1190 = vmatpush.msra.mxu0 %v851
    %1191 = vmatpush.msra.mxu0 %v843
    %1192 = vmatpush.msra.mxu0 %v835
    %1193 = vmatpush.msra.mxu0 %v827
    %1194 = vmatpush.msra.mxu0 %v819
    %1195 = vmatpush.msra.mxu0 %v811
    %1196 = vmatpush.msra.mxu0 %v803
    %1197 = vmatpush.msra.mxu0 %v795
    %1198 = vmatpush.msra.mxu0 %v787
    %1199 = vmatpush.msra.mxu0 %v779
    %1200 = vmatmul.f32.gmra.mxu0 %v136
    %v1201 = vpop.f32.mrf.mxu0
    %v1202 = vadd.f32 %v1182, %v1201
    %1203 = vdwg.mxu0
    %1204 = vmatpush.msra.mxu0 0.0
    %1205 = vmatpush.msra.mxu0 0.0
    %1206 = vmatpush.msra.mxu0 0.0
    %1207 = vmatpush.msra.mxu0 0.0
    %1208 = vmatpush.msra.mxu0 0.0
    %1209 = vmatpush.msra.mxu0 0.0
    %1210 = vmatpush.msra.mxu0 0.0
    %1211 = vmatpush.msra.mxu0 0.0
    %1212 = vmatpush.msra.mxu0 0.0
    %1213 = vmatpush.msra.mxu0 0.0
    %1214 = vmatpush.msra.mxu0 0.0
    %1215 = vmatpush.msra.mxu0 0.0
    %1216 = vmatpush.msra.mxu0 0.0
    %1217 = vmatpush.msra.mxu0 0.0
    %1218 = vmatpush.msra.mxu0 %v915
    %1219 = vmatpush.msra.mxu0 %v907
    %1220 = vmatmul.f32.gmra.mxu0 %v942
    %v1221 = vpop.f32.mrf.mxu0
    %v1222 = vadd.f32 %v1202, %v1221
    %1223 = vdwg.mxu0
    %1224 = vmatpush.msra.mxu0 %v260
    %1225 = vmatpush.msra.mxu0 %v252
    %1226 = vmatpush.msra.mxu0 %v244
    %1227 = vmatpush.msra.mxu0 %v236
    %1228 = vmatpush.msra.mxu0 %v228
    %1229 = vmatpush.msra.mxu0 %v220
    %1230 = vmatpush.msra.mxu0 %v212
    %1231 = vmatpush.msra.mxu0 %v204
    %1232 = vmatpush.msra.mxu0 %v196
    %1233 = vmatpush.msra.mxu0 %v188
    %1234 = vmatpush.msra.mxu0 %v180
    %1235 = vmatpush.msra.mxu0 %v172
    %1236 = vmatpush.msra.mxu0 %v164
    %1237 = vmatpush.msra.mxu0 %v156
    %1238 = vmatpush.msra.mxu0 %v148
    %1239 = vmatpush.msra.mxu0 %v140
    %1240 = vmatmul.f32.gmra.mxu0 %v131
    %v1241 = vpop.f32.mrf.mxu0
    %v1242 = vadd.f32 %v926, %v1241
    %1243 = vdwg.mxu0
    %1244 = vmatpush.msra.mxu0 %v388
    %1245 = vmatpush.msra.mxu0 %v380
    %1246 = vmatpush.msra.mxu0 %v372
    %1247 = vmatpush.msra.mxu0 %v364
    %1248 = vmatpush.msra.mxu0 %v356
    %1249 = vmatpush.msra.mxu0 %v348
    %1250 = vmatpush.msra.mxu0 %v340
    %1251 = vmatpush.msra.mxu0 %v332
    %1252 = vmatpush.msra.mxu0 %v324
    %1253 = vmatpush.msra.mxu0 %v316
    %1254 = vmatpush.msra.mxu0 %v308
    %1255 = vmatpush.msra.mxu0 %v300
    %1256 = vmatpush.msra.mxu0 %v292
    %1257 = vmatpush.msra.mxu0 %v284
    %1258 = vmatpush.msra.mxu0 %v276
    %1259 = vmatpush.msra.mxu0 %v268
    %1260 = vmatmul.f32.gmra.mxu0 %v132
    %v1261 = vpop.f32.mrf.mxu0
    %v1262 = vadd.f32 %v1242, %v1261
    %1263 = vdwg.mxu0
    %1264 = vmatpush.msra.mxu0 %v516
    %1265 = vmatpush.msra.mxu0 %v508
    %1266 = vmatpush.msra.mxu0 %v500
    %1267 = vmatpush.msra.mxu0 %v492
    %1268 = vmatpush.msra.mxu0 %v484
    %1269 = vmatpush.msra.mxu0 %v476
    %1270 = vmatpush.msra.mxu0 %v468
    %1271 = vmatpush.msra.mxu0 %v460
    %1272 = vmatpush.msra.mxu0 %v452
    %1273 = vmatpush.msra.mxu0 %v444
    %1274 = vmatpush.msra.mxu0 %v436
    %1275 = vmatpush.msra.mxu0 %v428
    %1276 = vmatpush.msra.mxu0 %v420
    %1277 = vmatpush.msra.mxu0 %v412
    %1278 = vmatpush.msra.mxu0 %v404
    %1279 = vmatpush.msra.mxu0 %v396
    %1280 = vmatmul.f32.gmra.mxu0 %v133
    %v1281 = vpop.f32.mrf.mxu0
    %v1282 = vadd.f32 %v1262, %v1281
    %1283 = vdwg.mxu0
    %1284 = vmatpush.msra.mxu0 %v644
    %1285 = vmatpush.msra.mxu0 %v636
    %1286 = vmatpush.msra.mxu0 %v628
    %1287 = vmatpush.msra.mxu0 %v620
    %1288 = vmatpush.msra.mxu0 %v612
    %1289 = vmatpush.msra.mxu0 %v604
    %1290 = vmatpush.msra.mxu0 %v596
    %1291 = vmatpush.msra.mxu0 %v588
    %1292 = vmatpush.msra.mxu0 %v580
    %1293 = vmatpush.msra.mxu0 %v572
    %1294 = vmatpush.msra.mxu0 %v564
    %1295 = vmatpush.msra.mxu0 %v556
    %1296 = vmatpush.msra.mxu0 %v548
    %1297 = vmatpush.msra.mxu0 %v540
    %1298 = vmatpush.msra.mxu0 %v532
    %1299 = vmatpush.msra.mxu0 %v524
    %1300 = vmatmul.f32.gmra.mxu0 %v134
    %v1301 = vpop.f32.mrf.mxu0
    %v1302 = vadd.f32 %v1282, %v1301
    %1303 = vdwg.mxu0
    %1304 = vmatpush.msra.mxu0 %v772
    %1305 = vmatpush.msra.mxu0 %v764
    %1306 = vmatpush.msra.mxu0 %v756
    %1307 = vmatpush.msra.mxu0 %v748
    %1308 = vmatpush.msra.mxu0 %v740
    %1309 = vmatpush.msra.mxu0 %v732
    %1310 = vmatpush.msra.mxu0 %v724
    %1311 = vmatpush.msra.mxu0 %v716
    %1312 = vmatpush.msra.mxu0 %v708
    %1313 = vmatpush.msra.mxu0 %v700
    %1314 = vmatpush.msra.mxu0 %v692
    %1315 = vmatpush.msra.mxu0 %v684
    %1316 = vmatpush.msra.mxu0 %v676
    %1317 = vmatpush.msra.mxu0 %v668
    %1318 = vmatpush.msra.mxu0 %v660
    %1319 = vmatpush.msra.mxu0 %v652
    %1320 = vmatmul.f32.gmra.mxu0 %v135
    %v1321 = vpop.f32.mrf.mxu0
    %v1322 = vadd.f32 %v1302, %v1321
    %1323 = vdwg.mxu0
    %1324 = vmatpush.msra.mxu0 %v900
    %1325 = vmatpush.msra.mxu0 %v892
    %1326 = vmatpush.msra.mxu0 %v884
    %1327 = vmatpush.msra.mxu0 %v876
    %1328 = vmatpush.msra.mxu0 %v868
    %1329 = vmatpush.msra.mxu0 %v860
    %1330 = vmatpush.msra.mxu0 %v852
    %1331 = vmatpush.msra.mxu0 %v844
    %1332 = vmatpush.msra.mxu0 %v836
    %1333 = vmatpush.msra.mxu0 %v828
    %1334 = vmatpush.msra.mxu0 %v820
    %1335 = vmatpush.msra.mxu0 %v812
    %1336 = vmatpush.msra.mxu0 %v804
    %1337 = vmatpush.msra.mxu0 %v796
    %1338 = vmatpush.msra.mxu0 %v788
    %1339 = vmatpush.msra.mxu0 %v780
    %1340 = vmatmul.f32.gmra.mxu0 %v136
    %v1341 = vpop.f32.mrf.mxu0
    %v1342 = vadd.f32 %v1322, %v1341
    %1343 = vdwg.mxu0
    %1344 = vmatpush.msra.mxu0 0.0
    %1345 = vmatpush.msra.mxu0 0.0
    %1346 = vmatpush.msra.mxu0 0.0
    %1347 = vmatpush.msra.mxu0 0.0
    %1348 = vmatpush.msra.mxu0 0.0
    %1349 = vmatpush.msra.mxu0 0.0
    %1350 = vmatpush.msra.mxu0 0.0
    %1351 = vmatpush.msra.mxu0 0.0
    %1352 = vmatpush.msra.mxu0 0.0
    %1353 = vmatpush.msra.mxu0 0.0
    %1354 = vmatpush.msra.mxu0 0.0
    %1355 = vmatpush.msra.mxu0 0.0
    %1356 = vmatpush.msra.mxu0 0.0
    %1357 = vmatpush.msra.mxu0 0.0
    %1358 = vmatpush.msra.mxu0 %v916
    %1359 = vmatpush.msra.mxu0 %v908
    %1360 = vmatmul.f32.gmra.mxu0 %v942
    %v1361 = vpop.f32.mrf.mxu0
    %v1362 = vadd.f32 %v1342, %v1361
    %1363 = vdwg.mxu0
    %1364 = vmatpush.msra.mxu0 %v261
    %1365 = vmatpush.msra.mxu0 %v253
    %1366 = vmatpush.msra.mxu0 %v245
    %1367 = vmatpush.msra.mxu0 %v237
    %1368 = vmatpush.msra.mxu0 %v229
    %1369 = vmatpush.msra.mxu0 %v221
    %1370 = vmatpush.msra.mxu0 %v213
    %1371 = vmatpush.msra.mxu0 %v205
    %1372 = vmatpush.msra.mxu0 %v197
    %1373 = vmatpush.msra.mxu0 %v189
    %1374 = vmatpush.msra.mxu0 %v181
    %1375 = vmatpush.msra.mxu0 %v173
    %1376 = vmatpush.msra.mxu0 %v165
    %1377 = vmatpush.msra.mxu0 %v157
    %1378 = vmatpush.msra.mxu0 %v149
    %1379 = vmatpush.msra.mxu0 %v141
    %1380 = vmatmul.f32.gmra.mxu0 %v131
    %v1381 = vpop.f32.mrf.mxu0
    %v1382 = vadd.f32 %v927, %v1381
    %1383 = vdwg.mxu0
    %1384 = vmatpush.msra.mxu0 %v389
    %1385 = vmatpush.msra.mxu0 %v381
    %1386 = vmatpush.msra.mxu0 %v373
    %1387 = vmatpush.msra.mxu0 %v365
    %1388 = vmatpush.msra.mxu0 %v357
    %1389 = vmatpush.msra.mxu0 %v349
    %1390 = vmatpush.msra.mxu0 %v341
    %1391 = vmatpush.msra.mxu0 %v333
    %1392 = vmatpush.msra.mxu0 %v325
    %1393 = vmatpush.msra.mxu0 %v317
    %1394 = vmatpush.msra.mxu0 %v309
    %1395 = vmatpush.msra.mxu0 %v301
    %1396 = vmatpush.msra.mxu0 %v293
    %1397 = vmatpush.msra.mxu0 %v285
    %1398 = vmatpush.msra.mxu0 %v277
    %1399 = vmatpush.msra.mxu0 %v269
    %1400 = vmatmul.f32.gmra.mxu0 %v132
    %v1401 = vpop.f32.mrf.mxu0
    %v1402 = vadd.f32 %v1382, %v1401
    %1403 = vdwg.mxu0
    %1404 = vmatpush.msra.mxu0 %v517
    %1405 = vmatpush.msra.mxu0 %v509
    %1406 = vmatpush.msra.mxu0 %v501
    %1407 = vmatpush.msra.mxu0 %v493
    %1408 = vmatpush.msra.mxu0 %v485
    %1409 = vmatpush.msra.mxu0 %v477
    %1410 = vmatpush.msra.mxu0 %v469
    %1411 = vmatpush.msra.mxu0 %v461
    %1412 = vmatpush.msra.mxu0 %v453
    %1413 = vmatpush.msra.mxu0 %v445
    %1414 = vmatpush.msra.mxu0 %v437
    %1415 = vmatpush.msra.mxu0 %v429
    %1416 = vmatpush.msra.mxu0 %v421
    %1417 = vmatpush.msra.mxu0 %v413
    %1418 = vmatpush.msra.mxu0 %v405
    %1419 = vmatpush.msra.mxu0 %v397
    %1420 = vmatmul.f32.gmra.mxu0 %v133
    %v1421 = vpop.f32.mrf.mxu0
    %v1422 = vadd.f32 %v1402, %v1421
    %1423 = vdwg.mxu0
    %1424 = vmatpush.msra.mxu0 %v645
    %1425 = vmatpush.msra.mxu0 %v637
    %1426 = vmatpush.msra.mxu0 %v629
    %1427 = vmatpush.msra.mxu0 %v621
    %1428 = vmatpush.msra.mxu0 %v613
    %1429 = vmatpush.msra.mxu0 %v605
    %1430 = vmatpush.msra.mxu0 %v597
    %1431 = vmatpush.msra.mxu0 %v589
    %1432 = vmatpush.msra.mxu0 %v581
    %1433 = vmatpush.msra.mxu0 %v573
    %1434 = vmatpush.msra.mxu0 %v565
    %1435 = vmatpush.msra.mxu0 %v557
    %1436 = vmatpush.msra.mxu0 %v549
    %1437 = vmatpush.msra.mxu0 %v541
    %1438 = vmatpush.msra.mxu0 %v533
    %1439 = vmatpush.msra.mxu0 %v525
    %1440 = vmatmul.f32.gmra.mxu0 %v134
    %v1441 = vpop.f32.mrf.mxu0
    %v1442 = vadd.f32 %v1422, %v1441
    %1443 = vdwg.mxu0
    %1444 = vmatpush.msra.mxu0 %v773
    %1445 = vmatpush.msra.mxu0 %v765
    %1446 = vmatpush.msra.mxu0 %v757
    %1447 = vmatpush.msra.mxu0 %v749
    %1448 = vmatpush.msra.mxu0 %v741
    %1449 = vmatpush.msra.mxu0 %v733
    %1450 = vmatpush.msra.mxu0 %v725
    %1451 = vmatpush.msra.mxu0 %v717
    %1452 = vmatpush.msra.mxu0 %v709
    %1453 = vmatpush.msra.mxu0 %v701
    %1454 = vmatpush.msra.mxu0 %v693
    %1455 = vmatpush.msra.mxu0 %v685
    %1456 = vmatpush.msra.mxu0 %v677
    %1457 = vmatpush.msra.mxu0 %v669
    %1458 = vmatpush.msra.mxu0 %v661
    %1459 = vmatpush.msra.mxu0 %v653
    %1460 = vmatmul.f32.gmra.mxu0 %v135
    %v1461 = vpop.f32.mrf.mxu0
    %v1462 = vadd.f32 %v1442, %v1461
    %1463 = vdwg.mxu0
    %1464 = vmatpush.msra.mxu0 %v901
    %1465 = vmatpush.msra.mxu0 %v893
    %1466 = vmatpush.msra.mxu0 %v885
    %1467 = vmatpush.msra.mxu0 %v877
    %1468 = vmatpush.msra.mxu0 %v869
    %1469 = vmatpush.msra.mxu0 %v861
    %1470 = vmatpush.msra.mxu0 %v853
    %1471 = vmatpush.msra.mxu0 %v845
    %1472 = vmatpush.msra.mxu0 %v837
    %1473 = vmatpush.msra.mxu0 %v829
    %1474 = vmatpush.msra.mxu0 %v821
    %1475 = vmatpush.msra.mxu0 %v813
    %1476 = vmatpush.msra.mxu0 %v805
    %1477 = vmatpush.msra.mxu0 %v797
    %1478 = vmatpush.msra.mxu0 %v789
    %1479 = vmatpush.msra.mxu0 %v781
    %1480 = vmatmul.f32.gmra.mxu0 %v136
    %v1481 = vpop.f32.mrf.mxu0
    %v1482 = vadd.f32 %v1462, %v1481
    %1483 = vdwg.mxu0
    %1484 = vmatpush.msra.mxu0 0.0
    %1485 = vmatpush.msra.mxu0 0.0
    %1486 = vmatpush.msra.mxu0 0.0
    %1487 = vmatpush.msra.mxu0 0.0
    %1488 = vmatpush.msra.mxu0 0.0
    %1489 = vmatpush.msra.mxu0 0.0
    %1490 = vmatpush.msra.mxu0 0.0
    %1491 = vmatpush.msra.mxu0 0.0
    %1492 = vmatpush.msra.mxu0 0.0
    %1493 = vmatpush.msra.mxu0 0.0
    %1494 = vmatpush.msra.mxu0 0.0
    %1495 = vmatpush.msra.mxu0 0.0
    %1496 = vmatpush.msra.mxu0 0.0
    %1497 = vmatpush.msra.mxu0 0.0
    %1498 = vmatpush.msra.mxu0 %v917
    %1499 = vmatpush.msra.mxu0 %v909
    %1500 = vmatmul.f32.gmra.mxu0 %v942
    %v1501 = vpop.f32.mrf.mxu0
    %v1502 = vadd.f32 %v1482, %v1501
    %1503 = vdwg.mxu0
    %1504 = vmatpush.msra.mxu0 %v262
    %1505 = vmatpush.msra.mxu0 %v254
    %1506 = vmatpush.msra.mxu0 %v246
    %1507 = vmatpush.msra.mxu0 %v238
    %1508 = vmatpush.msra.mxu0 %v230
    %1509 = vmatpush.msra.mxu0 %v222
    %1510 = vmatpush.msra.mxu0 %v214
    %1511 = vmatpush.msra.mxu0 %v206
    %1512 = vmatpush.msra.mxu0 %v198
    %1513 = vmatpush.msra.mxu0 %v190
    %1514 = vmatpush.msra.mxu0 %v182
    %1515 = vmatpush.msra.mxu0 %v174
    %1516 = vmatpush.msra.mxu0 %v166
    %1517 = vmatpush.msra.mxu0 %v158
    %1518 = vmatpush.msra.mxu0 %v150
    %1519 = vmatpush.msra.mxu0 %v142
    %1520 = vmatmul.f32.gmra.mxu0 %v131
    %v1521 = vpop.f32.mrf.mxu0
    %v1522 = vadd.f32 %v928, %v1521
    %1523 = vdwg.mxu0
    %1524 = vmatpush.msra.mxu0 %v390
    %1525 = vmatpush.msra.mxu0 %v382
    %1526 = vmatpush.msra.mxu0 %v374
    %1527 = vmatpush.msra.mxu0 %v366
    %1528 = vmatpush.msra.mxu0 %v358
    %1529 = vmatpush.msra.mxu0 %v350
    %1530 = vmatpush.msra.mxu0 %v342
    %1531 = vmatpush.msra.mxu0 %v334
    %1532 = vmatpush.msra.mxu0 %v326
    %1533 = vmatpush.msra.mxu0 %v318
    %1534 = vmatpush.msra.mxu0 %v310
    %1535 = vmatpush.msra.mxu0 %v302
    %1536 = vmatpush.msra.mxu0 %v294
    %1537 = vmatpush.msra.mxu0 %v286
    %1538 = vmatpush.msra.mxu0 %v278
    %1539 = vmatpush.msra.mxu0 %v270
    %1540 = vmatmul.f32.gmra.mxu0 %v132
    %v1541 = vpop.f32.mrf.mxu0
    %v1542 = vadd.f32 %v1522, %v1541
    %1543 = vdwg.mxu0
    %1544 = vmatpush.msra.mxu0 %v518
    %1545 = vmatpush.msra.mxu0 %v510
    %1546 = vmatpush.msra.mxu0 %v502
    %1547 = vmatpush.msra.mxu0 %v494
    %1548 = vmatpush.msra.mxu0 %v486
    %1549 = vmatpush.msra.mxu0 %v478
    %1550 = vmatpush.msra.mxu0 %v470
    %1551 = vmatpush.msra.mxu0 %v462
    %1552 = vmatpush.msra.mxu0 %v454
    %1553 = vmatpush.msra.mxu0 %v446
    %1554 = vmatpush.msra.mxu0 %v438
    %1555 = vmatpush.msra.mxu0 %v430
    %1556 = vmatpush.msra.mxu0 %v422
    %1557 = vmatpush.msra.mxu0 %v414
    %1558 = vmatpush.msra.mxu0 %v406
    %1559 = vmatpush.msra.mxu0 %v398
    %1560 = vmatmul.f32.gmra.mxu0 %v133
    %v1561 = vpop.f32.mrf.mxu0
    %v1562 = vadd.f32 %v1542, %v1561
    %1563 = vdwg.mxu0
    %1564 = vmatpush.msra.mxu0 %v646
    %1565 = vmatpush.msra.mxu0 %v638
    %1566 = vmatpush.msra.mxu0 %v630
    %1567 = vmatpush.msra.mxu0 %v622
    %1568 = vmatpush.msra.mxu0 %v614
    %1569 = vmatpush.msra.mxu0 %v606
    %1570 = vmatpush.msra.mxu0 %v598
    %1571 = vmatpush.msra.mxu0 %v590
    %1572 = vmatpush.msra.mxu0 %v582
    %1573 = vmatpush.msra.mxu0 %v574
    %1574 = vmatpush.msra.mxu0 %v566
    %1575 = vmatpush.msra.mxu0 %v558
    %1576 = vmatpush.msra.mxu0 %v550
    %1577 = vmatpush.msra.mxu0 %v542
    %1578 = vmatpush.msra.mxu0 %v534
    %1579 = vmatpush.msra.mxu0 %v526
    %1580 = vmatmul.f32.gmra.mxu0 %v134
    %v1581 = vpop.f32.mrf.mxu0
    %v1582 = vadd.f32 %v1562, %v1581
    %1583 = vdwg.mxu0
    %1584 = vmatpush.msra.mxu0 %v774
    %1585 = vmatpush.msra.mxu0 %v766
    %1586 = vmatpush.msra.mxu0 %v758
    %1587 = vmatpush.msra.mxu0 %v750
    %1588 = vmatpush.msra.mxu0 %v742
    %1589 = vmatpush.msra.mxu0 %v734
    %1590 = vmatpush.msra.mxu0 %v726
    %1591 = vmatpush.msra.mxu0 %v718
    %1592 = vmatpush.msra.mxu0 %v710
    %1593 = vmatpush.msra.mxu0 %v702
    %1594 = vmatpush.msra.mxu0 %v694
    %1595 = vmatpush.msra.mxu0 %v686
    %1596 = vmatpush.msra.mxu0 %v678
    %1597 = vmatpush.msra.mxu0 %v670
    %1598 = vmatpush.msra.mxu0 %v662
    %1599 = vmatpush.msra.mxu0 %v654
    %1600 = vmatmul.f32.gmra.mxu0 %v135
    %v1601 = vpop.f32.mrf.mxu0
    %v1602 = vadd.f32 %v1582, %v1601
    %1603 = vdwg.mxu0
    %1604 = vmatpush.msra.mxu0 %v902
    %1605 = vmatpush.msra.mxu0 %v894
    %1606 = vmatpush.msra.mxu0 %v886
    %1607 = vmatpush.msra.mxu0 %v878
    %1608 = vmatpush.msra.mxu0 %v870
    %1609 = vmatpush.msra.mxu0 %v862
    %1610 = vmatpush.msra.mxu0 %v854
    %1611 = vmatpush.msra.mxu0 %v846
    %1612 = vmatpush.msra.mxu0 %v838
    %1613 = vmatpush.msra.mxu0 %v830
    %1614 = vmatpush.msra.mxu0 %v822
    %1615 = vmatpush.msra.mxu0 %v814
    %1616 = vmatpush.msra.mxu0 %v806
    %1617 = vmatpush.msra.mxu0 %v798
    %1618 = vmatpush.msra.mxu0 %v790
    %1619 = vmatpush.msra.mxu0 %v782
    %1620 = vmatmul.f32.gmra.mxu0 %v136
    %v1621 = vpop.f32.mrf.mxu0
    %v1622 = vadd.f32 %v1602, %v1621
    %1623 = vdwg.mxu0
    %1624 = vmatpush.msra.mxu0 0.0
    %1625 = vmatpush.msra.mxu0 0.0
    %1626 = vmatpush.msra.mxu0 0.0
    %1627 = vmatpush.msra.mxu0 0.0
    %1628 = vmatpush.msra.mxu0 0.0
    %1629 = vmatpush.msra.mxu0 0.0
    %1630 = vmatpush.msra.mxu0 0.0
    %1631 = vmatpush.msra.mxu0 0.0
    %1632 = vmatpush.msra.mxu0 0.0
    %1633 = vmatpush.msra.mxu0 0.0
    %1634 = vmatpush.msra.mxu0 0.0
    %1635 = vmatpush.msra.mxu0 0.0
    %1636 = vmatpush.msra.mxu0 0.0
    %1637 = vmatpush.msra.mxu0 0.0
    %1638 = vmatpush.msra.mxu0 %v918
    %1639 = vmatpush.msra.mxu0 %v910
    %1640 = vmatmul.f32.gmra.mxu0 %v942
    %v1641 = vpop.f32.mrf.mxu0
    %v1642 = vadd.f32 %v1622, %v1641
    %1643 = vdwg.mxu0
    %1644 = vmatpush.msra.mxu0 %v263
    %1645 = vmatpush.msra.mxu0 %v255
    %1646 = vmatpush.msra.mxu0 %v247
    %1647 = vmatpush.msra.mxu0 %v239
    %1648 = vmatpush.msra.mxu0 %v231
    %1649 = vmatpush.msra.mxu0 %v223
    %1650 = vmatpush.msra.mxu0 %v215
    %1651 = vmatpush.msra.mxu0 %v207
    %1652 = vmatpush.msra.mxu0 %v199
    %1653 = vmatpush.msra.mxu0 %v191
    %1654 = vmatpush.msra.mxu0 %v183
    %1655 = vmatpush.msra.mxu0 %v175
    %1656 = vmatpush.msra.mxu0 %v167
    %1657 = vmatpush.msra.mxu0 %v159
    %1658 = vmatpush.msra.mxu0 %v151
    %1659 = vmatpush.msra.mxu0 %v143
    %1660 = vmatmul.f32.gmra.mxu0 %v131
    %v1661 = vpop.f32.mrf.mxu0
    %v1662 = vadd.f32 %v929, %v1661
    %1663 = vdwg.mxu0
    %1664 = vmatpush.msra.mxu0 %v391
    %1665 = vmatpush.msra.mxu0 %v383
    %1666 = vmatpush.msra.mxu0 %v375
    %1667 = vmatpush.msra.mxu0 %v367
    %1668 = vmatpush.msra.mxu0 %v359
    %1669 = vmatpush.msra.mxu0 %v351
    %1670 = vmatpush.msra.mxu0 %v343
    %1671 = vmatpush.msra.mxu0 %v335
    %1672 = vmatpush.msra.mxu0 %v327
    %1673 = vmatpush.msra.mxu0 %v319
    %1674 = vmatpush.msra.mxu0 %v311
    %1675 = vmatpush.msra.mxu0 %v303
    %1676 = vmatpush.msra.mxu0 %v295
    %1677 = vmatpush.msra.mxu0 %v287
    %1678 = vmatpush.msra.mxu0 %v279
    %1679 = vmatpush.msra.mxu0 %v271
    %1680 = vmatmul.f32.gmra.mxu0 %v132
    %v1681 = vpop.f32.mrf.mxu0
    %v1682 = vadd.f32 %v1662, %v1681
    %1683 = vdwg.mxu0
    %1684 = vmatpush.msra.mxu0 %v519
    %1685 = vmatpush.msra.mxu0 %v511
    %1686 = vmatpush.msra.mxu0 %v503
    %1687 = vmatpush.msra.mxu0 %v495
    %1688 = vmatpush.msra.mxu0 %v487
    %1689 = vmatpush.msra.mxu0 %v479
    %1690 = vmatpush.msra.mxu0 %v471
    %1691 = vmatpush.msra.mxu0 %v463
    %1692 = vmatpush.msra.mxu0 %v455
    %1693 = vmatpush.msra.mxu0 %v447
    %1694 = vmatpush.msra.mxu0 %v439
    %1695 = vmatpush.msra.mxu0 %v431
    %1696 = vmatpush.msra.mxu0 %v423
    %1697 = vmatpush.msra.mxu0 %v415
    %1698 = vmatpush.msra.mxu0 %v407
    %1699 = vmatpush.msra.mxu0 %v399
    %1700 = vmatmul.f32.gmra.mxu0 %v133
    %v1701 = vpop.f32.mrf.mxu0
    %v1702 = vadd.f32 %v1682, %v1701
    %1703 = vdwg.mxu0
    %1704 = vmatpush.msra.mxu0 %v647
    %1705 = vmatpush.msra.mxu0 %v639
    %1706 = vmatpush.msra.mxu0 %v631
    %1707 = vmatpush.msra.mxu0 %v623
    %1708 = vmatpush.msra.mxu0 %v615
    %1709 = vmatpush.msra.mxu0 %v607
    %1710 = vmatpush.msra.mxu0 %v599
    %1711 = vmatpush.msra.mxu0 %v591
    %1712 = vmatpush.msra.mxu0 %v583
    %1713 = vmatpush.msra.mxu0 %v575
    %1714 = vmatpush.msra.mxu0 %v567
    %1715 = vmatpush.msra.mxu0 %v559
    %1716 = vmatpush.msra.mxu0 %v551
    %1717 = vmatpush.msra.mxu0 %v543
    %1718 = vmatpush.msra.mxu0 %v535
    %1719 = vmatpush.msra.mxu0 %v527
    %1720 = vmatmul.f32.gmra.mxu0 %v134
    %v1721 = vpop.f32.mrf.mxu0
    %v1722 = vadd.f32 %v1702, %v1721
    %1723 = vdwg.mxu0
    %1724 = vmatpush.msra.mxu0 %v775
    %1725 = vmatpush.msra.mxu0 %v767
    %1726 = vmatpush.msra.mxu0 %v759
    %1727 = vmatpush.msra.mxu0 %v751
    %1728 = vmatpush.msra.mxu0 %v743
    %1729 = vmatpush.msra.mxu0 %v735
    %1730 = vmatpush.msra.mxu0 %v727
    %1731 = vmatpush.msra.mxu0 %v719
    %1732 = vmatpush.msra.mxu0 %v711
    %1733 = vmatpush.msra.mxu0 %v703
    %1734 = vmatpush.msra.mxu0 %v695
    %1735 = vmatpush.msra.mxu0 %v687
    %1736 = vmatpush.msra.mxu0 %v679
    %1737 = vmatpush.msra.mxu0 %v671
    %1738 = vmatpush.msra.mxu0 %v663
    %1739 = vmatpush.msra.mxu0 %v655
    %1740 = vmatmul.f32.gmra.mxu0 %v135
    %v1741 = vpop.f32.mrf.mxu0
    %v1742 = vadd.f32 %v1722, %v1741
    %1743 = vdwg.mxu0
    %1744 = vmatpush.msra.mxu0 %v903
    %1745 = vmatpush.msra.mxu0 %v895
    %1746 = vmatpush.msra.mxu0 %v887
    %1747 = vmatpush.msra.mxu0 %v879
    %1748 = vmatpush.msra.mxu0 %v871
    %1749 = vmatpush.msra.mxu0 %v863
    %1750 = vmatpush.msra.mxu0 %v855
    %1751 = vmatpush.msra.mxu0 %v847
    %1752 = vmatpush.msra.mxu0 %v839
    %1753 = vmatpush.msra.mxu0 %v831
    %1754 = vmatpush.msra.mxu0 %v823
    %1755 = vmatpush.msra.mxu0 %v815
    %1756 = vmatpush.msra.mxu0 %v807
    %1757 = vmatpush.msra.mxu0 %v799
    %1758 = vmatpush.msra.mxu0 %v791
    %1759 = vmatpush.msra.mxu0 %v783
    %1760 = vmatmul.f32.gmra.mxu0 %v136
    %v1761 = vpop.f32.mrf.mxu0
    %v1762 = vadd.f32 %v1742, %v1761
    %1763 = vdwg.mxu0
    %1764 = vmatpush.msra.mxu0 0.0
    %1765 = vmatpush.msra.mxu0 0.0
    %1766 = vmatpush.msra.mxu0 0.0
    %1767 = vmatpush.msra.mxu0 0.0
    %1768 = vmatpush.msra.mxu0 0.0
    %1769 = vmatpush.msra.mxu0 0.0
    %1770 = vmatpush.msra.mxu0 0.0
    %1771 = vmatpush.msra.mxu0 0.0
    %1772 = vmatpush.msra.mxu0 0.0
    %1773 = vmatpush.msra.mxu0 0.0
    %1774 = vmatpush.msra.mxu0 0.0
    %1775 = vmatpush.msra.mxu0 0.0
    %1776 = vmatpush.msra.mxu0 0.0
    %1777 = vmatpush.msra.mxu0 0.0
    %1778 = vmatpush.msra.mxu0 %v919
    %1779 = vmatpush.msra.mxu0 %v911
    %1780 = vmatmul.f32.gmra.mxu0 %v942
    %v1781 = vpop.f32.mrf.mxu0
    %v1782 = vadd.f32 %v1762, %v1781
    %1783 = vdwg.mxu0
    %1784 = vmatpush.msra.mxu0 %v264
    %1785 = vmatpush.msra.mxu0 %v256
    %1786 = vmatpush.msra.mxu0 %v248
    %1787 = vmatpush.msra.mxu0 %v240
    %1788 = vmatpush.msra.mxu0 %v232
    %1789 = vmatpush.msra.mxu0 %v224
    %1790 = vmatpush.msra.mxu0 %v216
    %1791 = vmatpush.msra.mxu0 %v208
    %1792 = vmatpush.msra.mxu0 %v200
    %1793 = vmatpush.msra.mxu0 %v192
    %1794 = vmatpush.msra.mxu0 %v184
    %1795 = vmatpush.msra.mxu0 %v176
    %1796 = vmatpush.msra.mxu0 %v168
    %1797 = vmatpush.msra.mxu0 %v160
    %1798 = vmatpush.msra.mxu0 %v152
    %1799 = vmatpush.msra.mxu0 %v144
    %1800 = vmatmul.f32.gmra.mxu0 %v131
    %v1801 = vpop.f32.mrf.mxu0
    %v1802 = vadd.f32 %v930, %v1801
    %1803 = vdwg.mxu0
    %1804 = vmatpush.msra.mxu0 %v392
    %1805 = vmatpush.msra.mxu0 %v384
    %1806 = vmatpush.msra.mxu0 %v376
    %1807 = vmatpush.msra.mxu0 %v368
    %1808 = vmatpush.msra.mxu0 %v360
    %1809 = vmatpush.msra.mxu0 %v352
    %1810 = vmatpush.msra.mxu0 %v344
    %1811 = vmatpush.msra.mxu0 %v336
    %1812 = vmatpush.msra.mxu0 %v328
    %1813 = vmatpush.msra.mxu0 %v320
    %1814 = vmatpush.msra.mxu0 %v312
    %1815 = vmatpush.msra.mxu0 %v304
    %1816 = vmatpush.msra.mxu0 %v296
    %1817 = vmatpush.msra.mxu0 %v288
    %1818 = vmatpush.msra.mxu0 %v280
    %1819 = vmatpush.msra.mxu0 %v272
    %1820 = vmatmul.f32.gmra.mxu0 %v132
    %v1821 = vpop.f32.mrf.mxu0
    %v1822 = vadd.f32 %v1802, %v1821
    %1823 = vdwg.mxu0
    %1824 = vmatpush.msra.mxu0 %v520
    %1825 = vmatpush.msra.mxu0 %v512
    %1826 = vmatpush.msra.mxu0 %v504
    %1827 = vmatpush.msra.mxu0 %v496
    %1828 = vmatpush.msra.mxu0 %v488
    %1829 = vmatpush.msra.mxu0 %v480
    %1830 = vmatpush.msra.mxu0 %v472
    %1831 = vmatpush.msra.mxu0 %v464
    %1832 = vmatpush.msra.mxu0 %v456
    %1833 = vmatpush.msra.mxu0 %v448
    %1834 = vmatpush.msra.mxu0 %v440
    %1835 = vmatpush.msra.mxu0 %v432
    %1836 = vmatpush.msra.mxu0 %v424
    %1837 = vmatpush.msra.mxu0 %v416
    %1838 = vmatpush.msra.mxu0 %v408
    %1839 = vmatpush.msra.mxu0 %v400
    %1840 = vmatmul.f32.gmra.mxu0 %v133
    %v1841 = vpop.f32.mrf.mxu0
    %v1842 = vadd.f32 %v1822, %v1841
    %1843 = vdwg.mxu0
    %1844 = vmatpush.msra.mxu0 %v648
    %1845 = vmatpush.msra.mxu0 %v640
    %1846 = vmatpush.msra.mxu0 %v632
    %1847 = vmatpush.msra.mxu0 %v624
    %1848 = vmatpush.msra.mxu0 %v616
    %1849 = vmatpush.msra.mxu0 %v608
    %1850 = vmatpush.msra.mxu0 %v600
    %1851 = vmatpush.msra.mxu0 %v592
    %1852 = vmatpush.msra.mxu0 %v584
    %1853 = vmatpush.msra.mxu0 %v576
    %1854 = vmatpush.msra.mxu0 %v568
    %1855 = vmatpush.msra.mxu0 %v560
    %1856 = vmatpush.msra.mxu0 %v552
    %1857 = vmatpush.msra.mxu0 %v544
    %1858 = vmatpush.msra.mxu0 %v536
    %1859 = vmatpush.msra.mxu0 %v528
    %1860 = vmatmul.f32.gmra.mxu0 %v134
    %v1861 = vpop.f32.mrf.mxu0
    %v1862 = vadd.f32 %v1842, %v1861
    %1863 = vdwg.mxu0
    %1864 = vmatpush.msra.mxu0 %v776
    %1865 = vmatpush.msra.mxu0 %v768
    %1866 = vmatpush.msra.mxu0 %v760
    %1867 = vmatpush.msra.mxu0 %v752
    %1868 = vmatpush.msra.mxu0 %v744
    %1869 = vmatpush.msra.mxu0 %v736
    %1870 = vmatpush.msra.mxu0 %v728
    %1871 = vmatpush.msra.mxu0 %v720
    %1872 = vmatpush.msra.mxu0 %v712
    %1873 = vmatpush.msra.mxu0 %v704
    %1874 = vmatpush.msra.mxu0 %v696
    %1875 = vmatpush.msra.mxu0 %v688
    %1876 = vmatpush.msra.mxu0 %v680
    %1877 = vmatpush.msra.mxu0 %v672
    %1878 = vmatpush.msra.mxu0 %v664
    %1879 = vmatpush.msra.mxu0 %v656
    %1880 = vmatmul.f32.gmra.mxu0 %v135
    %v1881 = vpop.f32.mrf.mxu0
    %v1882 = vadd.f32 %v1862, %v1881
    %1883 = vdwg.mxu0
    %1884 = vmatpush.msra.mxu0 %v904
    %1885 = vmatpush.msra.mxu0 %v896
    %1886 = vmatpush.msra.mxu0 %v888
    %1887 = vmatpush.msra.mxu0 %v880
    %1888 = vmatpush.msra.mxu0 %v872
    %1889 = vmatpush.msra.mxu0 %v864
    %1890 = vmatpush.msra.mxu0 %v856
    %1891 = vmatpush.msra.mxu0 %v848
    %1892 = vmatpush.msra.mxu0 %v840
    %1893 = vmatpush.msra.mxu0 %v832
    %1894 = vmatpush.msra.mxu0 %v824
    %1895 = vmatpush.msra.mxu0 %v816
    %1896 = vmatpush.msra.mxu0 %v808
    %1897 = vmatpush.msra.mxu0 %v800
    %1898 = vmatpush.msra.mxu0 %v792
    %1899 = vmatpush.msra.mxu0 %v784
    %1900 = vmatmul.f32.gmra.mxu0 %v136
    %v1901 = vpop.f32.mrf.mxu0
    %v1902 = vadd.f32 %v1882, %v1901
    %1903 = vdwg.mxu0
    %1904 = vmatpush.msra.mxu0 0.0
    %1905 = vmatpush.msra.mxu0 0.0
    %1906 = vmatpush.msra.mxu0 0.0
    %1907 = vmatpush.msra.mxu0 0.0
    %1908 = vmatpush.msra.mxu0 0.0
    %1909 = vmatpush.msra.mxu0 0.0
    %1910 = vmatpush.msra.mxu0 0.0
    %1911 = vmatpush.msra.mxu0 0.0
    %1912 = vmatpush.msra.mxu0 0.0
    %1913 = vmatpush.msra.mxu0 0.0
    %1914 = vmatpush.msra.mxu0 0.0
    %1915 = vmatpush.msra.mxu0 0.0
    %1916 = vmatpush.msra.mxu0 0.0
    %1917 = vmatpush.msra.mxu0 0.0
    %1918 = vmatpush.msra.mxu0 %v920
    %1919 = vmatpush.msra.mxu0 %v912
    %1920 = vmatmul.f32.gmra.mxu0 %v942
    %v1921 = vpop.f32.mrf.mxu0
    %v1922 = vadd.f32 %v1902, %v1921
    %1923 = vdwg.mxu0
    %1924 = vmatpush.msra.mxu0 %v265
    %1925 = vmatpush.msra.mxu0 %v257
    %1926 = vmatpush.msra.mxu0 %v249
    %1927 = vmatpush.msra.mxu0 %v241
    %1928 = vmatpush.msra.mxu0 %v233
    %1929 = vmatpush.msra.mxu0 %v225
    %1930 = vmatpush.msra.mxu0 %v217
    %1931 = vmatpush.msra.mxu0 %v209
    %1932 = vmatpush.msra.mxu0 %v201
    %1933 = vmatpush.msra.mxu0 %v193
    %1934 = vmatpush.msra.mxu0 %v185
    %1935 = vmatpush.msra.mxu0 %v177
    %1936 = vmatpush.msra.mxu0 %v169
    %1937 = vmatpush.msra.mxu0 %v161
    %1938 = vmatpush.msra.mxu0 %v153
    %1939 = vmatpush.msra.mxu0 %v145
    %1940 = vmatmul.f32.gmra.mxu0 %v131
    %v1941 = vpop.f32.mrf.mxu0
    %v1942 = vadd.f32 %v931, %v1941
    %1943 = vdwg.mxu0
    %1944 = vmatpush.msra.mxu0 %v393
    %1945 = vmatpush.msra.mxu0 %v385
    %1946 = vmatpush.msra.mxu0 %v377
    %1947 = vmatpush.msra.mxu0 %v369
    %1948 = vmatpush.msra.mxu0 %v361
    %1949 = vmatpush.msra.mxu0 %v353
    %1950 = vmatpush.msra.mxu0 %v345
    %1951 = vmatpush.msra.mxu0 %v337
    %1952 = vmatpush.msra.mxu0 %v329
    %1953 = vmatpush.msra.mxu0 %v321
    %1954 = vmatpush.msra.mxu0 %v313
    %1955 = vmatpush.msra.mxu0 %v305
    %1956 = vmatpush.msra.mxu0 %v297
    %1957 = vmatpush.msra.mxu0 %v289
    %1958 = vmatpush.msra.mxu0 %v281
    %1959 = vmatpush.msra.mxu0 %v273
    %1960 = vmatmul.f32.gmra.mxu0 %v132
    %v1961 = vpop.f32.mrf.mxu0
    %v1962 = vadd.f32 %v1942, %v1961
    %1963 = vdwg.mxu0
    %1964 = vmatpush.msra.mxu0 %v521
    %1965 = vmatpush.msra.mxu0 %v513
    %1966 = vmatpush.msra.mxu0 %v505
    %1967 = vmatpush.msra.mxu0 %v497
    %1968 = vmatpush.msra.mxu0 %v489
    %1969 = vmatpush.msra.mxu0 %v481
    %1970 = vmatpush.msra.mxu0 %v473
    %1971 = vmatpush.msra.mxu0 %v465
    %1972 = vmatpush.msra.mxu0 %v457
    %1973 = vmatpush.msra.mxu0 %v449
    %1974 = vmatpush.msra.mxu0 %v441
    %1975 = vmatpush.msra.mxu0 %v433
    %1976 = vmatpush.msra.mxu0 %v425
    %1977 = vmatpush.msra.mxu0 %v417
    %1978 = vmatpush.msra.mxu0 %v409
    %1979 = vmatpush.msra.mxu0 %v401
    %1980 = vmatmul.f32.gmra.mxu0 %v133
    %v1981 = vpop.f32.mrf.mxu0
    %v1982 = vadd.f32 %v1962, %v1981
    %1983 = vdwg.mxu0
    %1984 = vmatpush.msra.mxu0 %v649
    %1985 = vmatpush.msra.mxu0 %v641
    %1986 = vmatpush.msra.mxu0 %v633
    %1987 = vmatpush.msra.mxu0 %v625
    %1988 = vmatpush.msra.mxu0 %v617
    %1989 = vmatpush.msra.mxu0 %v609
    %1990 = vmatpush.msra.mxu0 %v601
    %1991 = vmatpush.msra.mxu0 %v593
    %1992 = vmatpush.msra.mxu0 %v585
    %1993 = vmatpush.msra.mxu0 %v577
    %1994 = vmatpush.msra.mxu0 %v569
    %1995 = vmatpush.msra.mxu0 %v561
    %1996 = vmatpush.msra.mxu0 %v553
    %1997 = vmatpush.msra.mxu0 %v545
    %1998 = vmatpush.msra.mxu0 %v537
    %1999 = vmatpush.msra.mxu0 %v529
    %2000 = vmatmul.f32.gmra.mxu0 %v134
    %v2001 = vpop.f32.mrf.mxu0
    %v2002 = vadd.f32 %v1982, %v2001
    %2003 = vdwg.mxu0
    %2004 = vmatpush.msra.mxu0 %v777
    %2005 = vmatpush.msra.mxu0 %v769
    %2006 = vmatpush.msra.mxu0 %v761
    %2007 = vmatpush.msra.mxu0 %v753
    %2008 = vmatpush.msra.mxu0 %v745
    %2009 = vmatpush.msra.mxu0 %v737
    %2010 = vmatpush.msra.mxu0 %v729
    %2011 = vmatpush.msra.mxu0 %v721
    %2012 = vmatpush.msra.mxu0 %v713
    %2013 = vmatpush.msra.mxu0 %v705
    %2014 = vmatpush.msra.mxu0 %v697
    %2015 = vmatpush.msra.mxu0 %v689
    %2016 = vmatpush.msra.mxu0 %v681
    %2017 = vmatpush.msra.mxu0 %v673
    %2018 = vmatpush.msra.mxu0 %v665
    %2019 = vmatpush.msra.mxu0 %v657
    %2020 = vmatmul.f32.gmra.mxu0 %v135
    %v2021 = vpop.f32.mrf.mxu0
    %v2022 = vadd.f32 %v2002, %v2021
    %2023 = vdwg.mxu0
    %2024 = vmatpush.msra.mxu0 %v905
    %2025 = vmatpush.msra.mxu0 %v897
    %2026 = vmatpush.msra.mxu0 %v889
    %2027 = vmatpush.msra.mxu0 %v881
    %2028 = vmatpush.msra.mxu0 %v873
    %2029 = vmatpush.msra.mxu0 %v865
    %2030 = vmatpush.msra.mxu0 %v857
    %2031 = vmatpush.msra.mxu0 %v849
    %2032 = vmatpush.msra.mxu0 %v841
    %2033 = vmatpush.msra.mxu0 %v833
    %2034 = vmatpush.msra.mxu0 %v825
    %2035 = vmatpush.msra.mxu0 %v817
    %2036 = vmatpush.msra.mxu0 %v809
    %2037 = vmatpush.msra.mxu0 %v801
    %2038 = vmatpush.msra.mxu0 %v793
    %2039 = vmatpush.msra.mxu0 %v785
    %2040 = vmatmul.f32.gmra.mxu0 %v136
    %v2041 = vpop.f32.mrf.mxu0
    %v2042 = vadd.f32 %v2022, %v2041
    %2043 = vdwg.mxu0
    %2044 = vmatpush.msra.mxu0 0.0
    %2045 = vmatpush.msra.mxu0 0.0
    %2046 = vmatpush.msra.mxu0 0.0
    %2047 = vmatpush.msra.mxu0 0.0
    %2048 = vmatpush.msra.mxu0 0.0
    %2049 = vmatpush.msra.mxu0 0.0
    %2050 = vmatpush.msra.mxu0 0.0
    %2051 = vmatpush.msra.mxu0 0.0
    %2052 = vmatpush.msra.mxu0 0.0
    %2053 = vmatpush.msra.mxu0 0.0
    %2054 = vmatpush.msra.mxu0 0.0
    %2055 = vmatpush.msra.mxu0 0.0
    %2056 = vmatpush.msra.mxu0 0.0
    %2057 = vmatpush.msra.mxu0 0.0
    %2058 = vmatpush.msra.mxu0 %v921
    %2059 = vmatpush.msra.mxu0 %v913
    %2060 = vmatmul.f32.gmra.mxu0 %v942
    %v2061 = vpop.f32.mrf.mxu0
    %v2062 = vadd.f32 %v2042, %v2061
    %2063 = vdwg.mxu0
    %v2064 = vmax.f32 %v1082, 0.0
    %v2065 = vmax.f32 %v1222, 0.0
    %v2066 = vmax.f32 %v1362, 0.0
    %v2067 = vmax.f32 %v1502, 0.0
    %v2068 = vmax.f32 %v1642, 0.0
    %v2069 = vmax.f32 %v1782, 0.0
    %v2070 = vmax.f32 %v1922, 0.0
    %v2071 = vmax.f32 %v2062, 0.0
    %v2072 = vld [vmem:[#allocation6] sm:$0xff]
    %v2073 = vld [vmem:[#allocation6 + $0x8] sm:$0xff]
    %v2074 = vld [vmem:[#allocation6 + $0x10] sm:$0xff]
    %v2075 = vld [vmem:[#allocation6 + $0x18] sm:$0xff]
    %v2076 = vld [vmem:[#allocation6 + $0x20] sm:$0xff]
    %v2077 = vld [vmem:[#allocation6 + $0x28] sm:$0xff]
    %v2078 = vld [vmem:[#allocation6 + $0x30] sm:$0xff]
    %v2079 = vld [vmem:[#allocation6 + $0x38] sm:$0xff]
    %v2080 = vld [vmem:[#allocation6 + $0x40] sm:$0xff]
    %v2081 = vld [vmem:[#allocation6 + $0x48] sm:$0xff]
    %v2082 = vld [vmem:[#allocation6 + $0x50] sm:$0xff]
    %v2083 = vld [vmem:[#allocation6 + $0x58] sm:$0xff]
    %v2084 = vld [vmem:[#allocation6 + $0x60] sm:$0xff]
    %v2085 = vld [vmem:[#allocation6 + $0x68] sm:$0xff]
    %v2086 = vld [vmem:[#allocation6 + $0x70] sm:$0xff]
    %v2087 = vld [vmem:[#allocation6 + $0x78] sm:$0xff]
    %v2088 = vld [vmem:[#allocation6 + $0x80] sm:$0xff]
    %v2089 = vld [vmem:[#allocation6 + $0x88] sm:$0xff]
    %v2090 = vld [vmem:[#allocation6 + $0x90] sm:$0xff]
    %v2091 = vld [vmem:[#allocation6 + $0x98] sm:$0xff]
    %v2092 = vld [vmem:[#allocation6 + $0xa0] sm:$0xff]
    %v2093 = vld [vmem:[#allocation6 + $0xa8] sm:$0xff]
    %v2094 = vld [vmem:[#allocation6 + $0xb0] sm:$0xff]
    %v2095 = vld [vmem:[#allocation6 + $0xb8] sm:$0xff]
    %v2096 = vld [vmem:[#allocation6 + $0xc0] sm:$0xff]
    %v2097 = vld [vmem:[#allocation6 + $0xc8] sm:$0xff]
    %v2098 = vld [vmem:[#allocation6 + $0xd0] sm:$0xff]
    %v2099 = vld [vmem:[#allocation6 + $0xd8] sm:$0xff]
    %v2100 = vld [vmem:[#allocation6 + $0xe0] sm:$0xff]
    %v2101 = vld [vmem:[#allocation6 + $0xe8] sm:$0xff]
    %v2102 = vld [vmem:[#allocation6 + $0xf0] sm:$0xff]
    %v2103 = vld [vmem:[#allocation6 + $0xf8] sm:$0xff]
    %v2104 = vld [vmem:[#allocation6 + $0x100] sm:$0xff]
    %v2105 = vld [vmem:[#allocation6 + $0x108] sm:$0xff]
    %v2106 = vld [vmem:[#allocation6 + $0x110] sm:$0xff]
    %v2107 = vld [vmem:[#allocation6 + $0x118] sm:$0xff]
    %v2108 = vld [vmem:[#allocation6 + $0x120] sm:$0xff]
    %v2109 = vld [vmem:[#allocation6 + $0x128] sm:$0xff]
    %v2110 = vld [vmem:[#allocation6 + $0x130] sm:$0xff]
    %v2111 = vld [vmem:[#allocation6 + $0x138] sm:$0xff]
    %v2112 = vld [vmem:[#allocation6 + $0x140] sm:$0xff]
    %v2113 = vld [vmem:[#allocation6 + $0x148] sm:$0xff]
    %v2114 = vld [vmem:[#allocation6 + $0x150] sm:$0xff]
    %v2115 = vld [vmem:[#allocation6 + $0x158] sm:$0xff]
    %v2116 = vld [vmem:[#allocation6 + $0x160] sm:$0xff]
    %v2117 = vld [vmem:[#allocation6 + $0x168] sm:$0xff]
    %v2118 = vld [vmem:[#allocation6 + $0x170] sm:$0xff]
    %v2119 = vld [vmem:[#allocation6 + $0x178] sm:$0xff]
    %v2120 = vld [vmem:[#allocation6 + $0x180] sm:$0xff]
    %v2121 = vld [vmem:[#allocation6 + $0x188] sm:$0xff]
    %v2122 = vld [vmem:[#allocation6 + $0x190] sm:$0xff]
    %v2123 = vld [vmem:[#allocation6 + $0x198] sm:$0xff]
    %v2124 = vld [vmem:[#allocation6 + $0x1a0] sm:$0xff]
    %v2125 = vld [vmem:[#allocation6 + $0x1a8] sm:$0xff]
    %v2126 = vld [vmem:[#allocation6 + $0x1b0] sm:$0xff]
    %v2127 = vld [vmem:[#allocation6 + $0x1b8] sm:$0xff]
    %v2128 = vld [vmem:[#allocation6 + $0x1c0] sm:$0xff]
    %v2129 = vld [vmem:[#allocation6 + $0x1c8] sm:$0xff]
    %v2130 = vld [vmem:[#allocation6 + $0x1d0] sm:$0xff]
    %v2131 = vld [vmem:[#allocation6 + $0x1d8] sm:$0xff]
    %v2132 = vld [vmem:[#allocation6 + $0x1e0] sm:$0xff]
    %v2133 = vld [vmem:[#allocation6 + $0x1e8] sm:$0xff]
    %v2134 = vld [vmem:[#allocation6 + $0x1f0] sm:$0xff]
    %v2135 = vld [vmem:[#allocation6 + $0x1f8] sm:$0xff]
    %v2136 = vld [vmem:[#allocation6 + $0x200] sm:$0xff]
    %v2137 = vld [vmem:[#allocation6 + $0x208] sm:$0xff]
    %v2138 = vld [vmem:[#allocation6 + $0x210] sm:$0xff]
    %v2139 = vld [vmem:[#allocation6 + $0x218] sm:$0xff]
    %v2140 = vld [vmem:[#allocation6 + $0x220] sm:$0xff]
    %v2141 = vld [vmem:[#allocation6 + $0x228] sm:$0xff]
    %v2142 = vld [vmem:[#allocation6 + $0x230] sm:$0xff]
    %v2143 = vld [vmem:[#allocation6 + $0x238] sm:$0xff]
    %v2144 = vld [vmem:[#allocation6 + $0x240] sm:$0xff]
    %v2145 = vld [vmem:[#allocation6 + $0x248] sm:$0xff]
    %v2146 = vld [vmem:[#allocation6 + $0x250] sm:$0xff]
    %v2147 = vld [vmem:[#allocation6 + $0x258] sm:$0xff]
    %v2148 = vld [vmem:[#allocation6 + $0x260] sm:$0xff]
    %v2149 = vld [vmem:[#allocation6 + $0x268] sm:$0xff]
    %v2150 = vld [vmem:[#allocation6 + $0x270] sm:$0xff]
    %v2151 = vld [vmem:[#allocation6 + $0x278] sm:$0xff]
    %v2152 = vld [vmem:[#allocation6 + $0x280] sm:$0xff]
    %v2153 = vld [vmem:[#allocation6 + $0x288] sm:$0xff]
    %v2154 = vld [vmem:[#allocation6 + $0x290] sm:$0xff]
    %v2155 = vld [vmem:[#allocation6 + $0x298] sm:$0xff]
    %v2156 = vld [vmem:[#allocation6 + $0x2a0] sm:$0xff]
    %v2157 = vld [vmem:[#allocation6 + $0x2a8] sm:$0xff]
    %v2158 = vld [vmem:[#allocation6 + $0x2b0] sm:$0xff]
    %v2159 = vld [vmem:[#allocation6 + $0x2b8] sm:$0xff]
    %v2160 = vld [vmem:[#allocation6 + $0x2c0] sm:$0xff]
    %v2161 = vld [vmem:[#allocation6 + $0x2c8] sm:$0xff]
    %v2162 = vld [vmem:[#allocation6 + $0x2d0] sm:$0xff]
    %v2163 = vld [vmem:[#allocation6 + $0x2d8] sm:$0xff]
    %v2164 = vld [vmem:[#allocation6 + $0x2e0] sm:$0xff]
    %v2165 = vld [vmem:[#allocation6 + $0x2e8] sm:$0xff]
    %v2166 = vld [vmem:[#allocation6 + $0x2f0] sm:$0xff]
    %v2167 = vld [vmem:[#allocation6 + $0x2f8] sm:$0xff]
    %v2168 = vld [vmem:[#allocation6 + $0x300] sm:$0xff]
    %v2169 = vld [vmem:[#allocation6 + $0x308] sm:$0xff]
    %v2170 = vld [vmem:[#allocation6 + $0x310] sm:$0xff]
    %v2171 = vld [vmem:[#allocation6 + $0x318] sm:$0xff]
    %v2172 = vld [vmem:[#allocation6 + $0x320] sm:$0xff]
    %v2173 = vld [vmem:[#allocation6 + $0x328] sm:$0xff]
    %v2174 = vld [vmem:[#allocation6 + $0x330] sm:$0xff]
    %v2175 = vld [vmem:[#allocation6 + $0x338] sm:$0xff]
    %v2176 = vld [vmem:[#allocation6 + $0x340] sm:$0xff]
    %v2177 = vld [vmem:[#allocation6 + $0x348] sm:$0xff]
    %v2178 = vld [vmem:[#allocation6 + $0x350] sm:$0xff]
    %v2179 = vld [vmem:[#allocation6 + $0x358] sm:$0xff]
    %v2180 = vld [vmem:[#allocation6 + $0x360] sm:$0xff]
    %v2181 = vld [vmem:[#allocation6 + $0x368] sm:$0xff]
    %v2182 = vld [vmem:[#allocation6 + $0x370] sm:$0xff]
    %v2183 = vld [vmem:[#allocation6 + $0x378] sm:$0xff]
    %v2184 = vld [vmem:[#allocation6 + $0x380] sm:$0xff]
    %v2185 = vld [vmem:[#allocation6 + $0x388] sm:$0xff]
    %v2186 = vld [vmem:[#allocation6 + $0x390] sm:$0xff]
    %v2187 = vld [vmem:[#allocation6 + $0x398] sm:$0xff]
    %v2188 = vld [vmem:[#allocation6 + $0x3a0] sm:$0xff]
    %v2189 = vld [vmem:[#allocation6 + $0x3a8] sm:$0xff]
    %v2190 = vld [vmem:[#allocation6 + $0x3b0] sm:$0xff]
    %v2191 = vld [vmem:[#allocation6 + $0x3b8] sm:$0xff]
    %v2192 = vld [vmem:[#allocation6 + $0x3c0] sm:$0xff]
    %v2193 = vld [vmem:[#allocation6 + $0x3c8] sm:$0xff]
    %v2194 = vld [vmem:[#allocation6 + $0x3d0] sm:$0xff]
    %v2195 = vld [vmem:[#allocation6 + $0x3d8] sm:$0xff]
    %v2196 = vld [vmem:[#allocation6 + $0x3e0] sm:$0xff]
    %v2197 = vld [vmem:[#allocation6 + $0x3e8] sm:$0xff]
    %v2198 = vld [vmem:[#allocation6 + $0x3f0] sm:$0xff]
    %v2199 = vld [vmem:[#allocation6 + $0x3f8] sm:$0xff]
    %v2200 = vld [vmem:[#allocation7] sm:$0x1]
    %v2202 = vperm.slane %v2200, 0
    %2204 = vmatpush.msra.mxu0 %v2087
    %2205 = vmatpush.msra.mxu0 %v2086
    %2206 = vmatpush.msra.mxu0 %v2085
    %2207 = vmatpush.msra.mxu0 %v2084
    %2208 = vmatpush.msra.mxu0 %v2083
    %2209 = vmatpush.msra.mxu0 %v2082
    %2210 = vmatpush.msra.mxu0 %v2081
    %2211 = vmatpush.msra.mxu0 %v2080
    %2212 = vmatpush.msra.mxu0 %v2079
    %2213 = vmatpush.msra.mxu0 %v2078
    %2214 = vmatpush.msra.mxu0 %v2077
    %2215 = vmatpush.msra.mxu0 %v2076
    %2216 = vmatpush.msra.mxu0 %v2075
    %2217 = vmatpush.msra.mxu0 %v2074
    %2218 = vmatpush.msra.mxu0 %v2073
    %2219 = vmatpush.msra.mxu0 %v2072
    %2220 = vmatmul.f32.gmra.mxu0 %v2064
    %v2221 = vpop.f32.mrf.mxu0
    %v2222 = vadd.f32 %v2202, %v2221
    %2223 = vdwg.mxu0
    %2224 = vmatpush.msra.mxu0 %v2103
    %2225 = vmatpush.msra.mxu0 %v2102
    %2226 = vmatpush.msra.mxu0 %v2101
    %2227 = vmatpush.msra.mxu0 %v2100
    %2228 = vmatpush.msra.mxu0 %v2099
    %2229 = vmatpush.msra.mxu0 %v2098
    %2230 = vmatpush.msra.mxu0 %v2097
    %2231 = vmatpush.msra.mxu0 %v2096
    %2232 = vmatpush.msra.mxu0 %v2095
    %2233 = vmatpush.msra.mxu0 %v2094
    %2234 = vmatpush.msra.mxu0 %v2093
    %2235 = vmatpush.msra.mxu0 %v2092
    %2236 = vmatpush.msra.mxu0 %v2091
    %2237 = vmatpush.msra.mxu0 %v2090
    %2238 = vmatpush.msra.mxu0 %v2089
    %2239 = vmatpush.msra.mxu0 %v2088
    %2240 = vmatmul.f32.gmra.mxu0 %v2065
    %v2241 = vpop.f32.mrf.mxu0
    %v2242 = vadd.f32 %v2222, %v2241
    %2243 = vdwg.mxu0
    %2244 = vmatpush.msra.mxu0 %v2119
    %2245 = vmatpush.msra.mxu0 %v2118
    %2246 = vmatpush.msra.mxu0 %v2117
    %2247 = vmatpush.msra.mxu0 %v2116
    %2248 = vmatpush.msra.mxu0 %v2115
    %2249 = vmatpush.msra.mxu0 %v2114
    %2250 = vmatpush.msra.mxu0 %v2113
    %2251 = vmatpush.msra.mxu0 %v2112
    %2252 = vmatpush.msra.mxu0 %v2111
    %2253 = vmatpush.msra.mxu0 %v2110
    %2254 = vmatpush.msra.mxu0 %v2109
    %2255 = vmatpush.msra.mxu0 %v2108
    %2256 = vmatpush.msra.mxu0 %v2107
    %2257 = vmatpush.msra.mxu0 %v2106
    %2258 = vmatpush.msra.mxu0 %v2105
    %2259 = vmatpush.msra.mxu0 %v2104
    %2260 = vmatmul.f32.gmra.mxu0 %v2066
    %v2261 = vpop.f32.mrf.mxu0
    %v2262 = vadd.f32 %v2242, %v2261
    %2263 = vdwg.mxu0
    %2264 = vmatpush.msra.mxu0 %v2135
    %2265 = vmatpush.msra.mxu0 %v2134
    %2266 = vmatpush.msra.mxu0 %v2133
    %2267 = vmatpush.msra.mxu0 %v2132
    %2268 = vmatpush.msra.mxu0 %v2131
    %2269 = vmatpush.msra.mxu0 %v2130
    %2270 = vmatpush.msra.mxu0 %v2129
    %2271 = vmatpush.msra.mxu0 %v2128
    %2272 = vmatpush.msra.mxu0 %v2127
    %2273 = vmatpush.msra.mxu0 %v2126
    %2274 = vmatpush.msra.mxu0 %v2125
    %2275 = vmatpush.msra.mxu0 %v2124
    %2276 = vmatpush.msra.mxu0 %v2123
    %2277 = vmatpush.msra.mxu0 %v2122
    %2278 = vmatpush.msra.mxu0 %v2121
    %2279 = vmatpush.msra.mxu0 %v2120
    %2280 = vmatmul.f32.gmra.mxu0 %v2067
    %v2281 = vpop.f32.mrf.mxu0
    %v2282 = vadd.f32 %v2262, %v2281
    %2283 = vdwg.mxu0
    %2284 = vmatpush.msra.mxu0 %v2151
    %2285 = vmatpush.msra.mxu0 %v2150
    %2286 = vmatpush.msra.mxu0 %v2149
    %2287 = vmatpush.msra.mxu0 %v2148
    %2288 = vmatpush.msra.mxu0 %v2147
    %2289 = vmatpush.msra.mxu0 %v2146
    %2290 = vmatpush.msra.mxu0 %v2145
    %2291 = vmatpush.msra.mxu0 %v2144
    %2292 = vmatpush.msra.mxu0 %v2143
    %2293 = vmatpush.msra.mxu0 %v2142
    %2294 = vmatpush.msra.mxu0 %v2141
    %2295 = vmatpush.msra.mxu0 %v2140
    %2296 = vmatpush.msra.mxu0 %v2139
    %2297 = vmatpush.msra.mxu0 %v2138
    %2298 = vmatpush.msra.mxu0 %v2137
    %2299 = vmatpush.msra.mxu0 %v2136
    %2300 = vmatmul.f32.gmra.mxu0 %v2068
    %v2301 = vpop.f32.mrf.mxu0
    %v2302 = vadd.f32 %v2282, %v2301
    %2303 = vdwg.mxu0
    %2304 = vmatpush.msra.mxu0 %v2167
    %2305 = vmatpush.msra.mxu0 %v2166
    %2306 = vmatpush.msra.mxu0 %v2165
    %2307 = vmatpush.msra.mxu0 %v2164
    %2308 = vmatpush.msra.mxu0 %v2163
    %2309 = vmatpush.msra.mxu0 %v2162
    %2310 = vmatpush.msra.mxu0 %v2161
    %2311 = vmatpush.msra.mxu0 %v2160
    %2312 = vmatpush.msra.mxu0 %v2159
    %2313 = vmatpush.msra.mxu0 %v2158
    %2314 = vmatpush.msra.mxu0 %v2157
    %2315 = vmatpush.msra.mxu0 %v2156
    %2316 = vmatpush.msra.mxu0 %v2155
    %2317 = vmatpush.msra.mxu0 %v2154
    %2318 = vmatpush.msra.mxu0 %v2153
    %2319 = vmatpush.msra.mxu0 %v2152
    %2320 = vmatmul.f32.gmra.mxu0 %v2069
    %v2321 = vpop.f32.mrf.mxu0
    %v2322 = vadd.f32 %v2302, %v2321
    %2323 = vdwg.mxu0
    %2324 = vmatpush.msra.mxu0 %v2183
    %2325 = vmatpush.msra.mxu0 %v2182
    %2326 = vmatpush.msra.mxu0 %v2181
    %2327 = vmatpush.msra.mxu0 %v2180
    %2328 = vmatpush.msra.mxu0 %v2179
    %2329 = vmatpush.msra.mxu0 %v2178
    %2330 = vmatpush.msra.mxu0 %v2177
    %2331 = vmatpush.msra.mxu0 %v2176
    %2332 = vmatpush.msra.mxu0 %v2175
    %2333 = vmatpush.msra.mxu0 %v2174
    %2334 = vmatpush.msra.mxu0 %v2173
    %2335 = vmatpush.msra.mxu0 %v2172
    %2336 = vmatpush.msra.mxu0 %v2171
    %2337 = vmatpush.msra.mxu0 %v2170
    %2338 = vmatpush.msra.mxu0 %v2169
    %2339 = vmatpush.msra.mxu0 %v2168
    %2340 = vmatmul.f32.gmra.mxu0 %v2070
    %v2341 = vpop.f32.mrf.mxu0
    %v2342 = vadd.f32 %v2322, %v2341
    %2343 = vdwg.mxu0
    %2344 = vmatpush.msra.mxu0 %v2199
    %2345 = vmatpush.msra.mxu0 %v2198
    %2346 = vmatpush.msra.mxu0 %v2197
    %2347 = vmatpush.msra.mxu0 %v2196
    %2348 = vmatpush.msra.mxu0 %v2195
    %2349 = vmatpush.msra.mxu0 %v2194
    %2350 = vmatpush.msra.mxu0 %v2193
    %2351 = vmatpush.msra.mxu0 %v2192
    %2352 = vmatpush.msra.mxu0 %v2191
    %2353 = vmatpush.msra.mxu0 %v2190
    %2354 = vmatpush.msra.mxu0 %v2189
    %2355 = vmatpush.msra.mxu0 %v2188
    %2356 = vmatpush.msra.mxu0 %v2187
    %2357 = vmatpush.msra.mxu0 %v2186
    %2358 = vmatpush.msra.mxu0 %v2185
    %2359 = vmatpush.msra.mxu0 %v2184
    %2360 = vmatmul.f32.gmra.mxu0 %v2071
    %v2361 = vpop.f32.mrf.mxu0
    %v2362 = vadd.f32 %v2342, %v2361
    %2363 = vdwg.mxu0
    %v2364 = vmax.f32 %v2362, 0.0
    %v2365 = vld [vmem:[#allocation9] sm:$0xff]
    %v2366 = vld [vmem:[#allocation9 + $0x8] sm:$0xff]
    %v2367 = vld [vmem:[#allocation9 + $0x10] sm:$0xff]
    %v2368 = vld [vmem:[#allocation9 + $0x18] sm:$0xff]
    %v2369 = vld [vmem:[#allocation9 + $0x20] sm:$0xff]
    %v2370 = vld [vmem:[#allocation9 + $0x28] sm:$0xff]
    %v2371 = vld [vmem:[#allocation9 + $0x30] sm:$0xff]
    %v2372 = vld [vmem:[#allocation9 + $0x38] sm:$0xff]
    %v2373 = vld [vmem:[#allocation9 + $0x40] sm:$0xff]
    %v2374 = vld [vmem:[#allocation9 + $0x48] sm:$0xff]
    %v2375 = vld [vmem:[#allocation9 + $0x50] sm:$0xff]
    %v2376 = vld [vmem:[#allocation9 + $0x58] sm:$0xff]
    %v2377 = vld [vmem:[#allocation9 + $0x60] sm:$0xff]
    %v2378 = vld [vmem:[#allocation9 + $0x68] sm:$0xff]
    %v2379 = vld [vmem:[#allocation9 + $0x70] sm:$0xff]
    %v2380 = vld [vmem:[#allocation9 + $0x78] sm:$0xff]
    %v2381 = vld [vmem:[#allocation10] sm:$0x1]
    %v2383 = vperm.slane %v2381, 0
    %2385 = vmatpush.msra.mxu0 %v2380
    %2386 = vmatpush.msra.mxu0 %v2379
    %2387 = vmatpush.msra.mxu0 %v2378
    %2388 = vmatpush.msra.mxu0 %v2377
    %2389 = vmatpush.msra.mxu0 %v2376
    %2390 = vmatpush.msra.mxu0 %v2375
    %2391 = vmatpush.msra.mxu0 %v2374
    %2392 = vmatpush.msra.mxu0 %v2373
    %2393 = vmatpush.msra.mxu0 %v2372
    %2394 = vmatpush.msra.mxu0 %v2371
    %2395 = vmatpush.msra.mxu0 %v2370
    %2396 = vmatpush.msra.mxu0 %v2369
    %2397 = vmatpush.msra.mxu0 %v2368
    %2398 = vmatpush.msra.mxu0 %v2367
    %2399 = vmatpush.msra.mxu0 %v2366
    %2400 = vmatpush.msra.mxu0 %v2365
    %2401 = vmatmul.f32.gmra.mxu0 %v2364
    %v2402 = vpop.f32.mrf.mxu0
    %v2403 = vadd.f32 %v2383, %v2402
    %2404 = vdwg.mxu0
    %2405 = vmax.xlane.f32.xlu0 %v2403
    %v2406 = vpop.xlane.xlu0 %2405
    %v2407 = vsub.f32 %v2403, %v2406
    %v2408 = vmul.f32 %v2407, 1.442695
    %v2409 = vpow.pop %v2408
    %2410 = vadd.xlane.f32.xlu0 %v2409
    %v2411 = vpop.xlane.xlu0 %2410
    %v2412 = vlog2.pop %v2411
    %v2413 = vmul.f32 %v2412, 0.6931472
    %v2414 = vsub.f32 %v2407, %v2413
    %2415 = vst [vmem:[%s8] sm:$0xff] %v2414
    // Predicated region
    $region58: #{minionn_fivelayer_forward.1} parent=1 // pred_check
      _
    $region59: #{minionn_fivelayer_forward.1} parent=1 // pred_check_branch
      %2417 = sbr.rel (0) target = $region61
    $region60: #{minionn_fivelayer_forward.1} parent=1 // pred_region
      _
    $region61: #{minionn_fivelayer_forward.1} parent=1 // pred_fallthru
      _
    // Predicated region
    $region62: #{minionn_fivelayer_forward.1} parent=1 // pred_check
      _
    $region63: #{minionn_fivelayer_forward.1} parent=1 // pred_check_branch
      %2419 = sbr.rel (0) target = $region65
    $region64: #{minionn_fivelayer_forward.1} parent=1 // pred_region
      _
    $region65: #{minionn_fivelayer_forward.1} parent=1 // pred_fallthru
      _
    %2420 = vsyncpa [#allocation3], 1
    %2421 = vsyncpa [#allocation5], 1
    %2422 = vsyncpa [#allocation8], 1
    %2423 = vsyncpa [#allocation11], 1

</llo_original>
